<compile_context>
chip_gen: v7x
topology: tpu7x:2x2x1
jax: 0.10.0
libtpu: 0.0.40
codegen_flags: <defaults>
</compile_context>

<pallas_src>
import functools

import jax
import jax.numpy as jnp
from jax import lax
from jax.experimental import pallas as pl
from jax.experimental.pallas import tpu as pltpu


# --------------------------------------------------------------------------- #
# Kernel 1: self-attention + residual + LayerNorm1
# --------------------------------------------------------------------------- #
def _attn_kernel(xr_ref,          # (TL, E) f32  : q-row tile (residual path)
                 xb_ref,          # (L,  E) bf16 : full sequence rows (K/V source)
                 wq_ref, wk_ref, wv_ref, wo_ref,   # (E, E) bf16, pre-transposed
                 cst_ref,         # (6, E) f32   : [bq, bk, bv, bo, gamma1, beta1]
                 o_ref,           # (TL, E) f32 out
                 kc_ref, vc_ref,  # (H, L, dh) bf16 VMEM scratch (per-batch K/V cache)
                 *, n_heads, tkv, eps):
    TL, E = xr_ref.shape
    L = xb_ref.shape[0]
    H = n_heads
    dh = E // H
    scale = 1.0 / (dh ** 0.5)
    nkv = L // tkv

    bq = cst_ref[0:1, :]
    bk = cst_ref[1:2, :]
    bv = cst_ref[2:3, :]
    bo = cst_ref[3:4, :]
    g1 = cst_ref[4:5, :]
    be1 = cst_ref[5:6, :]

    q_idx = pl.program_id(1)

    # ---- build the per-batch K/V cache once (q-tile 0), chunked over kv rows ----
    @pl.when(q_idx == 0)
    def _build_kv_cache():
        for c in range(nkv):
            xc = xb_ref[c * tkv:(c + 1) * tkv, :]                        # (tkv,E) bf16
            k = jnp.dot(xc, wk_ref[...], preferred_element_type=jnp.float32) + bk
            v = jnp.dot(xc, wv_ref[...], preferred_element_type=jnp.float32) + bv
            kh = jnp.transpose(k.astype(jnp.bfloat16).reshape(tkv, H, dh), (1, 0, 2))
            vh = jnp.transpose(v.astype(jnp.bfloat16).reshape(tkv, H, dh), (1, 0, 2))
            kc_ref[:, c * tkv:(c + 1) * tkv, :] = kh
            vc_ref[:, c * tkv:(c + 1) * tkv, :] = vh

    # ---- Q projection for this q-row tile (scale folded into q) ----
    xq = xr_ref[...]                                                      # f32 residual
    q = (jnp.dot(xq.astype(jnp.bfloat16), wq_ref[...],
                 preferred_element_type=jnp.float32) + bq) * scale        # (TL, E)
    qh = jnp.transpose(q.reshape(TL, H, dh), (1, 0, 2)).astype(jnp.bfloat16)  # (H,TL,dh)

    # ---- flash-style attention over K/V chunks with online softmax ----
    m = None
    l = None
    acc = None
    for c in range(nkv):
        kh = kc_ref[:, c * tkv:(c + 1) * tkv, :]                          # (H,tkv,dh)
        vh = vc_ref[:, c * tkv:(c + 1) * tkv, :]
        s = jnp.einsum('hqd,hkd->hqk', qh, kh,
                       preferred_element_type=jnp.float32)                # (H,TL,tkv)
        m_c = jnp.max(s, axis=-1, keepdims=True)
        if c == 0:
            m = m_c
            p = jnp.exp(s - m)
            l = jnp.sum(p, axis=-1, keepdims=True)
            acc = jnp.einsum('hqk,hkd->hqd', p.astype(jnp.bfloat16), vh,
                             preferred_element_type=jnp.float32)          # (H,TL,dh)
        else:
            m_new = jnp.maximum(m, m_c)
            alpha = jnp.exp(m - m_new)
            p = jnp.exp(s - m_new)
            l = alpha * l + jnp.sum(p, axis=-1, keepdims=True)
            acc = alpha * acc + jnp.einsum('hqk,hkd->hqd', p.astype(jnp.bfloat16),
                                           vh, preferred_element_type=jnp.float32)
            m = m_new

    # Deferred softmax normalization: reciprocal applied to the small accumulator.
    ctx = acc * pl.reciprocal(l, approx=True)                             # (H,TL,dh)
    ctx = jnp.transpose(ctx, (1, 0, 2)).reshape(TL, E)
    attn = jnp.dot(ctx.astype(jnp.bfloat16), wo_ref[...],
                   preferred_element_type=jnp.float32) + bo

    # ---- residual + LayerNorm1 (dropout1 == identity) ----
    y = xq + attn
    mu = jnp.mean(y, axis=-1, keepdims=True)
    var = jnp.mean((y - mu) ** 2, axis=-1, keepdims=True)
    y = (y - mu) * lax.rsqrt(var + eps)
    o_ref[...] = (y * g1 + be1).astype(o_ref.dtype)


# --------------------------------------------------------------------------- #
# Kernel 2: feed-forward (chunked over d_ff) + residual + LayerNorm2
# --------------------------------------------------------------------------- #
def _ffn_kernel(y_ref,            # (tr, E) f32 rows (output of kernel 1)
                w1_ref,           # (E, tf) bf16 chunk
                b1_ref,           # (1, tf) f32 chunk
                w2_ref,           # (tf, E) bf16 chunk
                cst_ref,          # (3, E) f32: [b2, gamma2, beta2]
                o_ref,            # (tr, E) f32 out
                acc_ref,          # (tr, E) f32 VMEM scratch accumulator
                *, eps):
    f = pl.program_id(1)

    @pl.when(f == 0)
    def _():
        acc_ref[...] = jnp.zeros_like(acc_ref)

    y = y_ref[...]                                                        # f32
    h = jnp.dot(y.astype(jnp.bfloat16), w1_ref[...],
                preferred_element_type=jnp.float32) + b1_ref[...]
    h = jnp.maximum(h, 0.0)                                               # ReLU (f32)
    acc_ref[...] += jnp.dot(h.astype(jnp.bfloat16), w2_ref[...],
                            preferred_element_type=jnp.float32)

    @pl.when(f == pl.num_programs(1) - 1)
    def _():
        b2 = cst_ref[0:1, :]
        g2 = cst_ref[1:2, :]
        be2 = cst_ref[2:3, :]
        z = y + acc_ref[...] + b2                                         # residual
        mu = jnp.mean(z, axis=-1, keepdims=True)
        var = jnp.mean((z - mu) ** 2, axis=-1, keepdims=True)
        z = (z - mu) * lax.rsqrt(var + eps)
        o_ref[...] = (z * g2 + be2).astype(o_ref.dtype)


# --------------------------------------------------------------------------- #
# Wrapper
# --------------------------------------------------------------------------- #
def _pick_tile(n, target, multiple):
    """Largest exact divisor of n that is <= target and a multiple of `multiple`;
    falls back to n itself (full dim satisfies the BlockSpec rule)."""
    if n <= target:
        return n
    d = (target // multiple) * multiple
    while d >= multiple:
        if n % d == 0:
            return d
        d -= multiple
    return n


def _tpu_vmem_capacity(default=128 * 1024 * 1024):
    try:
        info = pltpu.get_tpu_info()
        cap = getattr(info, "vmem_capacity_bytes", None)
        if cap:
            return int(cap)
    except Exception:
        pass
    return default


def transformer_encoder_layer(src, params, *, n_heads, eps=1e-5):
    """src: (L, N, E) float32, params in PyTorch layout. Returns (L, N, E)."""
    L, N, E = src.shape
    H = n_heads
    assert E % H == 0, "d_model must be divisible by n_heads"
    dh = E // H
    (in_w, in_b, out_w, out_b, w1, b1, w2, b2, g1, be1, g2, be2) = params
    F = w1.shape[0]

    x = jnp.transpose(src, (1, 0, 2)).astype(jnp.float32)     # (N, L, E) residual path
    x_bf = x.astype(jnp.bfloat16)                             # bf16 copy for matmuls

    # Pre-transpose / split loop-invariant weights once; bf16 MXU operands.
    wq = in_w[:E].T.astype(jnp.bfloat16)                      # (E, E)
    wk = in_w[E:2 * E].T.astype(jnp.bfloat16)                 # (E, E)
    wv = in_w[2 * E:].T.astype(jnp.bfloat16)                  # (E, E)
    wo = out_w.T.astype(jnp.bfloat16)                         # (E, E)
    w1t = w1.T.astype(jnp.bfloat16)                           # (E, F)
    w2t = w2.T.astype(jnp.bfloat16)                           # (F, E)

    # Pack small per-feature vectors into two const arrays (fewer tiny DMAs).
    attn_consts = jnp.concatenate(
        [in_b[:, :E], in_b[:, E:2 * E], in_b[:, 2 * E:], out_b, g1, be1],
        axis=0).astype(jnp.float32)                           # (6, E)
    ffn_consts = jnp.concatenate([b2, g2, be2], axis=0).astype(jnp.float32)  # (3, E)

    # Generation-aware budgets (v7x: 64 MiB VMEM per TC; v5e/v6e: 128 MiB).
    vmem_cap = _tpu_vmem_capacity()
    vmem_limit = min(int(vmem_cap * 3 // 4), 96 * 1024 * 1024)
    q_target = 256 if vmem_cap >= 96 * 1024 * 1024 else 128

    tl = _pick_tile(L, q_target, 8)       # q-row tile (second-last BlockSpec dim)
    tkv = _pick_tile(L, 512, 8)           # K/V chunk (scratch slice)
    nq = L // tl

    attn = functools.partial(_attn_kernel, n_heads=H, tkv=tkv, eps=eps)
    y = pl.pallas_call(
        attn,
        out_shape=jax.ShapeDtypeStruct((N, L, E), jnp.float32),
        grid=(N, nq),
        in_specs=[
            pl.BlockSpec((None, tl, E), lambda b, q: (b, q, 0)),   # f32 q rows
            pl.BlockSpec((None, L, E), lambda b, q: (b, 0, 0)),    # bf16 full rows
            pl.BlockSpec((E, E), lambda b, q: (0, 0)),             # wq
            pl.BlockSpec((E, E), lambda b, q: (0, 0)),             # wk
            pl.BlockSpec((E, E), lambda b, q: (0, 0)),             # wv
            pl.BlockSpec((E, E), lambda b, q: (0, 0)),             # wo
            pl.BlockSpec((6, E), lambda b, q: (0, 0)),             # packed consts
        ],
        out_specs=pl.BlockSpec((None, tl, E), lambda b, q: (b, q, 0)),
        scratch_shapes=[
            pltpu.VMEM((H, L, dh), jnp.bfloat16),                  # K cache
            pltpu.VMEM((H, L, dh), jnp.bfloat16),                  # V cache
        ],
        compiler_params=pltpu.CompilerParams(
            dimension_semantics=("parallel", "arbitrary"),
            vmem_limit_bytes=vmem_limit,
        ),
    )(x, x_bf, wq, wk, wv, wo, attn_consts)

    # ---- FFN + residual + LayerNorm2, streamed over d_ff chunks ----
    R = N * L
    y2 = y.reshape(R, E)
    tr = _pick_tile(R, q_target, 8)        # row tile
    tf = _pick_tile(F, 512, 128)           # d_ff chunk (lane-aligned when chunked)

    ffn = functools.partial(_ffn_kernel, eps=eps)
    z = pl.pallas_call(
        ffn,
        out_shape=jax.ShapeDtypeStruct((R, E), jnp.float32),
        grid=(R // tr, F // tf),
        in_specs=[
            pl.BlockSpec((tr, E), lambda r, f: (r, 0)),            # rows (reused over f)
            pl.BlockSpec((E, tf), lambda r, f: (0, f)),            # w1 chunk
            pl.BlockSpec((1, tf), lambda r, f: (0, f)),            # b1 chunk
            pl.BlockSpec((tf, E), lambda r, f: (f, 0)),            # w2 chunk
            pl.BlockSpec((3, E), lambda r, f: (0, 0)),             # packed consts
        ],
        out_specs=pl.BlockSpec((tr, E), lambda r, f: (r, 0)),
        scratch_shapes=[pltpu.VMEM((tr, E), jnp.float32)],
        compiler_params=pltpu.CompilerParams(
            dimension_semantics=("parallel", "arbitrary"),
            vmem_limit_bytes=vmem_limit,
        ),
    )(y2, w1t, b1, w2t, ffn_consts)

    out = z.reshape(N, L, E)
    return jnp.transpose(out, (1, 0, 2)).astype(src.dtype)


# --------------------------------------------------------------------------- #
# Pure-JAX reference and test harness
# --------------------------------------------------------------------------- #
def _reference(src, params, *, n_heads, eps=1e-5):
    """Pure-JAX f32 reference of the same forward (eval-mode dropout)."""
    (in_w, in_b, out_w, out_b, w1, b1, w2, b2, g1, be1, g2, be2) = params
    L, N, E = src.shape
    dh = E // n_heads

    x = src.astype(jnp.float32)                      # (L, N, E)
    qkv = jnp.einsum('lne,fe->lnf', x, in_w) + in_b[0]
    q, k, v = qkv[..., :E], qkv[..., E:2 * E], qkv[..., 2 * E:]

    def split_heads(t):  # (L, N, E) -> (N, H, L, dh)
        return jnp.transpose(t.reshape(L, N, n_heads, dh), (1, 2, 0, 3))

    qh, kh, vh = split_heads(q), split_heads(k), split_heads(v)
    s = jnp.einsum('nhld,nhmd->nhlm', qh, kh) / (dh ** 0.5)
    p = jax.nn.softmax(s, axis=-1)
    o = jnp.einsum('nhlm,nhmd->nhld', p, vh)         # (N, H, L, dh)
    o = jnp.transpose(o, (2, 0, 1, 3)).reshape(L, N, E)
    attn = jnp.einsum('lne,fe->lnf', o, out_w) + out_b[0]

    def ln(t, g, b):
        mu = jnp.mean(t, axis=-1, keepdims=True)
        var = jnp.mean((t - mu) ** 2, axis=-1, keepdims=True)
        return (t - mu) * lax.rsqrt(var + eps) * g[0] + b[0]

    y = ln(x + attn, g1, be1)
    ff = jnp.maximum(jnp.einsum('lne,fe->lnf', y, w1) + b1[0], 0.0)
    ff = jnp.einsum('lnf,ef->lne', ff, w2) + b2[0]
    return ln(y + ff, g2, be2)


def init_params(key, d_model, n_heads, d_ff):
    ks = jax.random.split(key, 6)
    s = 0.02
    in_w = s * jax.random.normal(ks[0], (3 * d_model, d_model), jnp.float32)
    in_b = s * jax.random.normal(ks[1], (1, 3 * d_model), jnp.float32)
    out_w = s * jax.random.normal(ks[2], (d_model, d_model), jnp.float32)
    out_b = jnp.zeros((1, d_model), jnp.float32)
    w1 = s * jax.random.normal(ks[3], (d_ff, d_model), jnp.float32)
    b1 = s * jax.random.normal(ks[4], (1, d_ff), jnp.float32)
    w2 = s * jax.random.normal(ks[5], (d_model, d_ff), jnp.float32)
    b2 = jnp.zeros((1, d_model), jnp.float32)
    g1 = jnp.ones((1, d_model), jnp.float32)
    be1 = jnp.zeros((1, d_model), jnp.float32)
    g2 = jnp.ones((1, d_model), jnp.float32)
    be2 = jnp.zeros((1, d_model), jnp.float32)
    return (in_w, in_b, out_w, out_b, w1, b1, w2, b2, g1, be1, g2, be2)


if __name__ == "__main__":
    d_model, n_heads, d_ff = 32, 4, 64
    seq_len, batch = 8, 2

    key = jax.random.PRNGKey(0)
    k_src, k_par = jax.random.split(key)
    src = jax.random.normal(k_src, (seq_len, batch, d_model), jnp.float32)
    params = init_params(k_par, d_model, n_heads, d_ff)

    out = transformer_encoder_layer(src, params, n_heads=n_heads)
    out = jax.block_until_ready(out)

    ref = _reference(src, params, n_heads=n_heads)
    assert out.shape == (seq_len, batch, d_model)
    # bf16 MXU operands + approx softmax reciprocal => looser tolerance vs f32 ref.
    assert jnp.allclose(out, ref, atol=2e-2, rtol=2e-2), "kernel mismatch vs reference"

    print("KERNEL_OK")
</pallas_src>

<mosaic_0001>
module attributes {stable_mosaic.version = 11 : i64} {
  func.func @_attn_kernel(%arg0: i32, %arg1: i32, %arg2: memref<1x8x32xf32, #tpu.memory_space<vmem>>, %arg3: memref<1x8x32xbf16, #tpu.memory_space<vmem>>, %arg4: memref<32x32xbf16, #tpu.memory_space<vmem>>, %arg5: memref<32x32xbf16, #tpu.memory_space<vmem>>, %arg6: memref<32x32xbf16, #tpu.memory_space<vmem>>, %arg7: memref<32x32xbf16, #tpu.memory_space<vmem>>, %arg8: memref<6x32xf32, #tpu.memory_space<vmem>>, %arg9: memref<1x8x32xf32, #tpu.memory_space<vmem>>, %arg10: memref<4x8x8xbf16, #tpu.memory_space<vmem>>, %arg11: memref<4x8x8xbf16, #tpu.memory_space<vmem>>) attributes {dimension_semantics = [#tpu.dimension_semantics<parallel>, #tpu.dimension_semantics<arbitrary>], iteration_bounds = array<i64: 2, 1>, scalar_prefetch = 0 : i64, scratch_operands = 2 : i64, tpu.core_type = #tpu.core_type<tc>, window_params = [{transform_indices = @transform_0, window_bounds = array<i64: 1, 8, 32>}, {transform_indices = @transform_1, window_bounds = array<i64: 1, 8, 32>}, {pipeline_mode = #tpu.pipeline_mode<synchronous>, transform_indices = @transform_2, window_bounds = array<i64: 32, 32>}, {pipeline_mode = #tpu.pipeline_mode<synchronous>, transform_indices = @transform_3, window_bounds = array<i64: 32, 32>}, {pipeline_mode = #tpu.pipeline_mode<synchronous>, transform_indices = @transform_4, window_bounds = array<i64: 32, 32>}, {pipeline_mode = #tpu.pipeline_mode<synchronous>, transform_indices = @transform_5, window_bounds = array<i64: 32, 32>}, {pipeline_mode = #tpu.pipeline_mode<synchronous>, transform_indices = @transform_6, window_bounds = array<i64: 6, 32>}, {transform_indices = @transform_7, window_bounds = array<i64: 1, 8, 32>}]} {
    %c0 = arith.constant 0 : index
    %c0_0 = arith.constant 0 : index
    %0 = vector.load %arg8[%c0, %c0_0] : memref<6x32xf32, #tpu.memory_space<vmem>>, vector<1x32xf32>
    %c1 = arith.constant 1 : index
    %c0_1 = arith.constant 0 : index
    %1 = vector.load %arg8[%c1, %c0_1] : memref<6x32xf32, #tpu.memory_space<vmem>>, vector<1x32xf32>
    %c2 = arith.constant 2 : index
    %c0_2 = arith.constant 0 : index
    %2 = vector.load %arg8[%c2, %c0_2] : memref<6x32xf32, #tpu.memory_space<vmem>>, vector<1x32xf32>
    %c3 = arith.constant 3 : index
    %c0_3 = arith.constant 0 : index
    %3 = vector.load %arg8[%c3, %c0_3] : memref<6x32xf32, #tpu.memory_space<vmem>>, vector<1x32xf32>
    %c4 = arith.constant 4 : index
    %c0_4 = arith.constant 0 : index
    %4 = vector.load %arg8[%c4, %c0_4] : memref<6x32xf32, #tpu.memory_space<vmem>>, vector<1x32xf32>
    %c5 = arith.constant 5 : index
    %c0_5 = arith.constant 0 : index
    %5 = vector.load %arg8[%c5, %c0_5] : memref<6x32xf32, #tpu.memory_space<vmem>>, vector<1x32xf32>
    %c0_i32 = arith.constant 0 : i32
    %6 = arith.cmpi eq, %arg1, %c0_i32 : i32
    %7 = arith.extui %6 : i1 to i32
    %c0_i32_6 = arith.constant 0 : i32
    %8 = arith.cmpi ne, %7, %c0_i32_6 : i32
    scf.if %8 {
      %c0_34 = arith.constant 0 : index
      %c0_35 = arith.constant 0 : index
      %c0_36 = arith.constant 0 : index
      %69 = vector.load %arg3[%c0_34, %c0_35, %c0_36] : memref<1x8x32xbf16, #tpu.memory_space<vmem>>, vector<1x8x32xbf16>
      %70 = vector.shape_cast %69 : vector<1x8x32xbf16> to vector<8x32xbf16>
      %c0_37 = arith.constant 0 : index
      %c0_38 = arith.constant 0 : index
      %71 = vector.load %arg5[%c0_37, %c0_38] : memref<32x32xbf16, #tpu.memory_space<vmem>>, vector<32x32xbf16>
      %cst_39 = arith.constant dense<0.000000e+00> : vector<8x32xf32>
      %72 = tpu.matmul %70, %71, %cst_39 {dimension_numbers = #tpu.dot_dimension_numbers<[1], [0], [0], [1], [0, 0, 1, 1], [], []>} : vector<8x32xbf16>, vector<32x32xbf16>, vector<8x32xf32> -> vector<8x32xf32>
      %73 = vector.broadcast %1 : vector<1x32xf32> to vector<8x32xf32>
      %74 = arith.addf %72, %73 : vector<8x32xf32>
      %c0_40 = arith.constant 0 : index
      %c0_41 = arith.constant 0 : index
      %75 = vector.load %arg6[%c0_40, %c0_41] : memref<32x32xbf16, #tpu.memory_space<vmem>>, vector<32x32xbf16>
      %cst_42 = arith.constant dense<0.000000e+00> : vector<8x32xf32>
      %76 = tpu.matmul %70, %75, %cst_42 {dimension_numbers = #tpu.dot_dimension_numbers<[1], [0], [0], [1], [0, 0, 1, 1], [], []>} : vector<8x32xbf16>, vector<32x32xbf16>, vector<8x32xf32> -> vector<8x32xf32>
      %77 = vector.broadcast %2 : vector<1x32xf32> to vector<8x32xf32>
      %78 = arith.addf %76, %77 : vector<8x32xf32>
      %79 = arith.truncf %74 : vector<8x32xf32> to vector<8x32xbf16>
      %80 = vector.shape_cast %79 : vector<8x32xbf16> to vector<8x4x8xbf16>
      %81 = tpu.transpose %80, [1, 0, 2] : vector<8x4x8xbf16> -> vector<4x8x8xbf16>
      %82 = arith.truncf %78 : vector<8x32xf32> to vector<8x32xbf16>
      %83 = vector.shape_cast %82 : vector<8x32xbf16> to vector<8x4x8xbf16>
      %84 = tpu.transpose %83, [1, 0, 2] : vector<8x4x8xbf16> -> vector<4x8x8xbf16>
      %c0_43 = arith.constant 0 : index
      %c0_44 = arith.constant 0 : index
      %c0_45 = arith.constant 0 : index
      %85 = vector.load %arg10[%c0_43, %c0_44, %c0_45] : memref<4x8x8xbf16, #tpu.memory_space<vmem>>, vector<4x8x8xbf16>
      tpu.vector_store %arg10[%c0_43, %c0_44, %c0_45], %81 {strides = array<i32>} : memref<4x8x8xbf16, #tpu.memory_space<vmem>>, vector<4x8x8xbf16>,
      %c0_46 = arith.constant 0 : index
      %c0_47 = arith.constant 0 : index
      %c0_48 = arith.constant 0 : index
      %86 = vector.load %arg11[%c0_46, %c0_47, %c0_48] : memref<4x8x8xbf16, #tpu.memory_space<vmem>>, vector<4x8x8xbf16>
      tpu.vector_store %arg11[%c0_46, %c0_47, %c0_48], %84 {strides = array<i32>} : memref<4x8x8xbf16, #tpu.memory_space<vmem>>, vector<4x8x8xbf16>,
    } else {
    }
    %c0_7 = arith.constant 0 : index
    %c0_8 = arith.constant 0 : index
    %c0_9 = arith.constant 0 : index
    %9 = vector.load %arg2[%c0_7, %c0_8, %c0_9] : memref<1x8x32xf32, #tpu.memory_space<vmem>>, vector<1x8x32xf32>
    %10 = vector.shape_cast %9 : vector<1x8x32xf32> to vector<8x32xf32>
    %11 = arith.truncf %10 : vector<8x32xf32> to vector<8x32xbf16>
    %c0_10 = arith.constant 0 : index
    %c0_11 = arith.constant 0 : index
    %12 = vector.load %arg4[%c0_10, %c0_11] : memref<32x32xbf16, #tpu.memory_space<vmem>>, vector<32x32xbf16>
    %cst = arith.constant dense<0.000000e+00> : vector<8x32xf32>
    %13 = tpu.matmul %11, %12, %cst {dimension_numbers = #tpu.dot_dimension_numbers<[1], [0], [0], [1], [0, 0, 1, 1], [], []>} : vector<8x32xbf16>, vector<32x32xbf16>, vector<8x32xf32> -> vector<8x32xf32>
    %14 = vector.broadcast %0 : vector<1x32xf32> to vector<8x32xf32>
    %15 = arith.addf %13, %14 : vector<8x32xf32>
    %cst_12 = arith.constant 0.353553385 : f32
    %16 = vector.broadcast %cst_12 : f32 to vector<8x32xf32>
    %17 = arith.mulf %15, %16 : vector<8x32xf32>
    %18 = vector.shape_cast %17 : vector<8x32xf32> to vector<8x4x8xf32>
    %19 = tpu.transpose %18, [1, 0, 2] : vector<8x4x8xf32> -> vector<4x8x8xf32>
    %20 = arith.truncf %19 : vector<4x8x8xf32> to vector<4x8x8xbf16>
    %c0_13 = arith.constant 0 : index
    %c0_14 = arith.constant 0 : index
    %c0_15 = arith.constant 0 : index
    %21 = vector.load %arg10[%c0_13, %c0_14, %c0_15] : memref<4x8x8xbf16, #tpu.memory_space<vmem>>, vector<4x8x8xbf16>
    %c0_16 = arith.constant 0 : index
    %c0_17 = arith.constant 0 : index
    %c0_18 = arith.constant 0 : index
    %22 = vector.load %arg11[%c0_16, %c0_17, %c0_18] : memref<4x8x8xbf16, #tpu.memory_space<vmem>>, vector<4x8x8xbf16>
    "tpu.trace_start"() <{level = 10 : i32, message = "hqd,hkd->hqk"}> : () -> ()
    %cst_19 = arith.constant dense<0.000000e+00> : vector<4x8x8xf32>
    %23 = tpu.matmul %20, %21, %cst_19 {dimension_numbers = #tpu.dot_dimension_numbers<[2], [2], [1], [1], [0, 0, 0, 1, 1, 1], [0], [0]>} : vector<4x8x8xbf16>, vector<4x8x8xbf16>, vector<4x8x8xf32> -> vector<4x8x8xf32>
    "tpu.trace_stop"() : () -> ()
    %cst_20 = arith.constant dense<0xFF800000> : vector<4x8xf32>
    %24 = vector.multi_reduction <maximumf>, %23, %cst_20 [2] : vector<4x8x8xf32> to vector<4x8xf32>
    %25 = vector.shape_cast %24 : vector<4x8xf32> to vector<4x8x1xf32>
    %26 = vector.broadcast %25 : vector<4x8x1xf32> to vector<4x8x8xf32>
    %27 = arith.subf %23, %26 : vector<4x8x8xf32>
    %28 = math.exp %27 : vector<4x8x8xf32>
    %cst_21 = arith.constant dense<0.000000e+00> : vector<4x8xf32>
    %29 = vector.multi_reduction <add>, %28, %cst_21 [2] : vector<4x8x8xf32> to vector<4x8xf32>
    %30 = vector.shape_cast %29 : vector<4x8xf32> to vector<4x8x1xf32>
    %31 = arith.truncf %28 : vector<4x8x8xf32> to vector<4x8x8xbf16>
    "tpu.trace_start"() <{level = 10 : i32, message = "hqk,hkd->hqd"}> : () -> ()
    %cst_22 = arith.constant dense<0.000000e+00> : vector<4x8x8xf32>
    %32 = tpu.matmul %31, %22, %cst_22 {dimension_numbers = #tpu.dot_dimension_numbers<[2], [1], [1], [2], [0, 0, 0, 1, 1, 2], [0], [0]>} : vector<4x8x8xbf16>, vector<4x8x8xbf16>, vector<4x8x8xf32> -> vector<4x8x8xf32>
    "tpu.trace_stop"() : () -> ()
    %33 = tpu.reciprocal %30 {approx = true} : vector<4x8x1xf32> -> vector<4x8x1xf32>
    %34 = vector.broadcast %33 : vector<4x8x1xf32> to vector<4x8x8xf32>
    %35 = arith.mulf %32, %34 : vector<4x8x8xf32>
    %36 = tpu.transpose %35, [1, 0, 2] : vector<4x8x8xf32> -> vector<8x4x8xf32>
    %37 = vector.shape_cast %36 : vector<8x4x8xf32> to vector<8x32xf32>
    %38 = arith.truncf %37 : vector<8x32xf32> to vector<8x32xbf16>
    %c0_23 = arith.constant 0 : index
    %c0_24 = arith.constant 0 : index
    %39 = vector.load %arg7[%c0_23, %c0_24] : memref<32x32xbf16, #tpu.memory_space<vmem>>, vector<32x32xbf16>
    %cst_25 = arith.constant dense<0.000000e+00> : vector<8x32xf32>
    %40 = tpu.matmul %38, %39, %cst_25 {dimension_numbers = #tpu.dot_dimension_numbers<[1], [0], [0], [1], [0, 0, 1, 1], [], []>} : vector<8x32xbf16>, vector<32x32xbf16>, vector<8x32xf32> -> vector<8x32xf32>
    %41 = vector.broadcast %3 : vector<1x32xf32> to vector<8x32xf32>
    %42 = arith.addf %40, %41 : vector<8x32xf32>
    %43 = arith.addf %10, %42 : vector<8x32xf32>
    %cst_26 = arith.constant dense<0.000000e+00> : vector<8xf32>
    %44 = vector.multi_reduction <add>, %43, %cst_26 [1] : vector<8x32xf32> to vector<8xf32>
    %45 = vector.shape_cast %44 : vector<8xf32> to vector<8x1xf32>
    %cst_27 = arith.constant 3.200000e+01 : f32
    %46 = vector.broadcast %cst_27 : f32 to vector<8x1xf32>
    %47 = arith.divf %45, %46 : vector<8x1xf32>
    %48 = vector.broadcast %47 : vector<8x1xf32> to vector<8x32xf32>
    %49 = arith.subf %43, %48 : vector<8x32xf32>
    %50 = arith.mulf %49, %49 : vector<8x32xf32>
    %cst_28 = arith.constant dense<0.000000e+00> : vector<8xf32>
    %51 = vector.multi_reduction <add>, %50, %cst_28 [1] : vector<8x32xf32> to vector<8xf32>
    %52 = vector.shape_cast %51 : vector<8xf32> to vector<8x1xf32>
    %cst_29 = arith.constant 3.200000e+01 : f32
    %53 = vector.broadcast %cst_29 : f32 to vector<8x1xf32>
    %54 = arith.divf %52, %53 : vector<8x1xf32>
    %55 = vector.broadcast %47 : vector<8x1xf32> to vector<8x32xf32>
    %56 = arith.subf %43, %55 : vector<8x32xf32>
    %cst_30 = arith.constant 9.99999974E-6 : f32
    %57 = vector.broadcast %cst_30 : f32 to vector<8x1xf32>
    %58 = arith.addf %54, %57 : vector<8x1xf32>
    %59 = math.rsqrt %58 : vector<8x1xf32>
    %60 = vector.broadcast %59 : vector<8x1xf32> to vector<8x32xf32>
    %61 = arith.mulf %56, %60 : vector<8x32xf32>
    %62 = vector.broadcast %4 : vector<1x32xf32> to vector<8x32xf32>
    %63 = arith.mulf %61, %62 : vector<8x32xf32>
    %64 = vector.broadcast %5 : vector<1x32xf32> to vector<8x32xf32>
    %65 = arith.addf %63, %64 : vector<8x32xf32>
    %c0_31 = arith.constant 0 : index
    %c0_32 = arith.constant 0 : index
    %c0_33 = arith.constant 0 : index
    %66 = vector.load %arg9[%c0_31, %c0_32, %c0_33] : memref<1x8x32xf32, #tpu.memory_space<vmem>>, vector<1x8x32xf32>
    %67 = vector.shape_cast %66 : vector<1x8x32xf32> to vector<8x32xf32>
    %68 = vector.shape_cast %65 : vector<8x32xf32> to vector<1x8x32xf32>
    tpu.vector_store %arg9[%c0_31, %c0_32, %c0_33], %68 {strides = array<i32>} : memref<1x8x32xf32, #tpu.memory_space<vmem>>, vector<1x8x32xf32>,
    return
  }
  func.func @transform_0(%arg0: i32, %arg1: i32) -> (i32, i32, i32) {
    %c0_i32 = arith.constant 0 : i32
    %c0_i32_0 = arith.constant 0 : i32
    return %arg0, %arg1, %c0_i32 : i32, i32, i32
  }
  func.func @transform_1(%arg0: i32, %arg1: i32) -> (i32, i32, i32) {
    %c0_i32 = arith.constant 0 : i32
    %c0_i32_0 = arith.constant 0 : i32
    %c0_i32_1 = arith.constant 0 : i32
    return %arg0, %c0_i32, %c0_i32_0 : i32, i32, i32
  }
  func.func @transform_2(%arg0: i32, %arg1: i32) -> (i32, i32) {
    %c0_i32 = arith.constant 0 : i32
    %c0_i32_0 = arith.constant 0 : i32
    %c0_i32_1 = arith.constant 0 : i32
    return %c0_i32, %c0_i32_0 : i32, i32
  }
  func.func @transform_3(%arg0: i32, %arg1: i32) -> (i32, i32) {
    %c0_i32 = arith.constant 0 : i32
    %c0_i32_0 = arith.constant 0 : i32
    %c0_i32_1 = arith.constant 0 : i32
    return %c0_i32, %c0_i32_0 : i32, i32
  }
  func.func @transform_4(%arg0: i32, %arg1: i32) -> (i32, i32) {
    %c0_i32 = arith.constant 0 : i32
    %c0_i32_0 = arith.constant 0 : i32
    %c0_i32_1 = arith.constant 0 : i32
    return %c0_i32, %c0_i32_0 : i32, i32
  }
  func.func @transform_5(%arg0: i32, %arg1: i32) -> (i32, i32) {
    %c0_i32 = arith.constant 0 : i32
    %c0_i32_0 = arith.constant 0 : i32
    %c0_i32_1 = arith.constant 0 : i32
    return %c0_i32, %c0_i32_0 : i32, i32
  }
  func.func @transform_6(%arg0: i32, %arg1: i32) -> (i32, i32) {
    %c0_i32 = arith.constant 0 : i32
    %c0_i32_0 = arith.constant 0 : i32
    %c0_i32_1 = arith.constant 0 : i32
    return %c0_i32, %c0_i32_0 : i32, i32
  }
  func.func @transform_7(%arg0: i32, %arg1: i32) -> (i32, i32, i32) {
    %c0_i32 = arith.constant 0 : i32
    %c0_i32_0 = arith.constant 0 : i32
    return %arg0, %arg1, %c0_i32 : i32, i32, i32
  }
}

</mosaic_0001>

<llo_original>
// kernel: tpu_custom_call.1
$region0: #{tpu_custom_call.1}
  #allocation0 [shape = 'u32[]', space=smem, size = 0x4, offset = 0x4, fixed_abs, tag = 'smem constant byte address 0x4 - core index']
  #allocation1 [shape = 'u32[144,128]{1,0:T(1,128)}', space=vmem, size = 0x12000, scoped, tag = 'internal scratch']
  #allocation2 [shape = 'bf16[4,8,8]{2,1,0:T(8,128)(2,1)}', space=vmem, size = 0x2000, scoped, tag = 'scratch operand']
  #allocation3 [shape = 'bf16[4,8,8]{2,1,0:T(8,128)(2,1)}', space=vmem, size = 0x2000, scoped, tag = 'scratch operand']
  %s0 = inlined_call_operand.hbm [shape: f32[2,8,32], index: 0, kind: input, shape index: {}]
  %s1 = inlined_call_operand.hbm [shape: bf16[2,8,32], index: 1, kind: input, shape index: {}]
  %s2 = inlined_call_operand.hbm [shape: bf16[32,32], index: 2, kind: input, shape index: {}]
  %s3 = inlined_call_operand.hbm [shape: bf16[32,32], index: 3, kind: input, shape index: {}]
  %s4 = inlined_call_operand.hbm [shape: bf16[32,32], index: 4, kind: input, shape index: {}]
  %s5 = inlined_call_operand.hbm [shape: bf16[32,32], index: 5, kind: input, shape index: {}]
  %s6 = inlined_call_operand.hbm [shape: f32[6,32], index: 6, kind: input, shape index: {}]
  %s7 = inlined_call_operand.hbm [shape: f32[2,8,32], index: 7, kind: output, shape index: {}]
  %s8 = sld [smem:[#allocation0]]
  $region93: #{tpu_custom_call.1} parent=0
    _
  %s10 = ssub.s32 1, %s8
  %s11 = scalar_select 0, %s10, %s8
  $region1: #{tpu_custom_call.1} parent=0
    #allocation4 [shape = 'u8[8192]{0}', space=vmem, size = 0x2000, scoped, tag = 'input window, operand 0']
    #allocation5 [shape = 's32[2]{0}', space=sflag, size = 0x8, scoped, tag = 'scoped memory for tpu_custom_call.1']
    #allocation6 [shape = 's32[2]{0}', space=sflag, size = 0x8, scoped, tag = 'scoped memory for tpu_custom_call.1']
    #allocation7 [shape = 'u8[4096]{0}', space=vmem, size = 0x1000, scoped, tag = 'input window, operand 1']
    #allocation8 [shape = 's32[2]{0}', space=sflag, size = 0x8, scoped, tag = 'scoped memory for tpu_custom_call.1']
    #allocation9 [shape = 'u8[8192]{0}', space=vmem, size = 0x2000, scoped, tag = 'input window, operand 2, single buffered']
    #allocation10 [shape = 'u8[8192]{0}', space=vmem, size = 0x2000, scoped, tag = 'input window, operand 3, single buffered']
    #allocation11 [shape = 's32[1]{0}', space=sflag, size = 0x4, scoped, tag = 'scoped memory for tpu_custom_call.1']
    #allocation12 [shape = 'u8[8192]{0}', space=vmem, size = 0x2000, scoped, tag = 'input window, operand 4, single buffered']
    #allocation13 [shape = 'u8[8192]{0}', space=vmem, size = 0x2000, scoped, tag = 'input window, operand 5, single buffered']
    #allocation14 [shape = 's32[1]{0}', space=sflag, size = 0x4, scoped, tag = 'scoped memory for tpu_custom_call.1']
    #allocation15 [shape = 'u8[4096]{0}', space=vmem, size = 0x1000, scoped, tag = 'input window, operand 6, single buffered']
    #allocation16 [shape = 'u8[8192]{0}', space=vmem, size = 0x2000, scoped, tag = 'output window, operand 0']
    %12 = vsyncpa [#allocation5], 0
    %s13 = scalar_lea.sflag [#allocation5], 1
    %14 = vsyncpa %s13, 0
    %15 = vsyncpa [#allocation8], 0
    %s16 = scalar_lea.sflag [#allocation8], 1
    %17 = vsyncpa %s16, 0
    %18 = vsyncpa [#allocation11], 0
    %19 = vsyncpa [#allocation14], 0
    %20 = vsyncpa [#allocation6], 0
    %s21 = scalar_lea.sflag [#allocation6], 1
    %22 = vsyncpa %s21, 0
    loop: start=0, step=1, limit=4
    $region2: #{tpu_custom_call.1} parent=1 // loop_pre_header
      _
    $region3: #{tpu_custom_call.1} parent=1 // loop_header
      %s24 = sphi 0, %s28
      %p25 = scmp.ge.s32.totalorder %s24, 4
      %s31 = sphi 0, %s43
      %s32 = sphi 0, %s39
      %s33 = sphi 0, %s31
      %s34 = sphi 0, %s32
      %s35 = sphi 0, %s33
      %s36 = sphi 0, %s34
      %s48 = sphi 0, %s50
      %s51 = sphi 0, %s48
      %s52 = sphi 0, %s51
      %s68 = sphi 0, %s52
      %s74 = sphi 0, %s76
      %s77 = sphi 0, %s74
      %s78 = sphi 0, %s77
      %s94 = sphi 0, %s78
      %s98 = sphi 0, %s98
      %s100 = sphi 0, %s98
      %s101 = sphi 0, %s100
      %s115 = sphi 0, %s101
      %s119 = sphi 0, %s119
      %s121 = sphi 0, %s119
      %s122 = sphi 0, %s121
      %s136 = sphi 0, %s122
      %s140 = sphi 0, %s140
      %s142 = sphi 0, %s140
      %s143 = sphi 0, %s142
      %s157 = sphi 0, %s143
      %s161 = sphi 0, %s161
      %s163 = sphi 0, %s161
      %s164 = sphi 0, %s163
      %s178 = sphi 0, %s164
      %s182 = sphi 0, %s182
      %s184 = sphi 0, %s182
      %s185 = sphi 0, %s184
      %s199 = sphi 0, %s185
      %s207 = sphi 0, %s209
      %s210 = sphi 0, %s207
      %s211 = sphi 0, %s210
      %s227 = sphi 0, %s211
    $region4: #{tpu_custom_call.1} parent=1 // loop_header_branch
      %27 = sbr.rel (%p25) target = $region8
    $region5: #{tpu_custom_call.1} parent=1 // loop_body
      %s29 = ssub.s32 %s24, 1
      %s30 = ssub.s32 %s24, 2
      %s37 = sadd.s32 1, %s32
      %p38 = scmp.ge.s32.totalorder %s37, 1
      %s39 = scalar_select %p38, 0, %s37
      %s40 = sadd.s32 1, %s31
      %s41 = scalar_select %p38, %s40, %s31
      %p42 = scmp.ge.s32.totalorder %s41, 2
      %s43 = scalar_select %p42, 0, %s41
      %s44 = ssub.s32 %s31, %s43
      %s45 = ssub.s32 %s32, %s39
      %s46 = sor.u32 %s44, %s45
      %p47 = scmp.eq.s32.totalorder %s46, 0
      %s49 = sadd.s32 %s48, 1
      %s50 = scalar_select %p47, %s48, %s49
      %p53 = pneg %p47
      %p54 = scmp.eq.s32.totalorder %s24, 1
      %p55 = por %p53, %p54
      %p56 = scmp.ne.s32.totalorder %s48, %s51
      %p57 = scmp.eq.s32.totalorder %s24, 0
      %p58 = por %p56, %p57
      %p59 = scmp.ne.s32.totalorder %s48, %s51
      %p60 = scmp.eq.s32.totalorder %s29, 1
      %p61 = por %p59, %p60
      %p62 = scmp.ne.s32.totalorder %s51, %s52
      %p63 = scmp.eq.s32.totalorder %s29, 0
      %p64 = por %p62, %p63
      %p65 = scmp.ne.s32.totalorder %s51, %s52
      %p66 = scmp.eq.s32.totalorder %s30, 1
      %p67 = por %p65, %p66
      %p69 = scmp.ne.s32.totalorder %s52, %s68
      %p70 = scmp.eq.s32.totalorder %s30, 0
      %p71 = por %p69, %p70
      %s72 = ssub.s32 %s31, %s43
      %p73 = scmp.eq.s32.totalorder %s72, 0
      %s75 = sadd.s32 %s74, 1
      %s76 = scalar_select %p73, %s74, %s75
      %p79 = pneg %p73
      %p80 = scmp.eq.s32.totalorder %s24, 1
      %p81 = por %p79, %p80
      %p82 = scmp.ne.s32.totalorder %s74, %s77
      %p83 = scmp.eq.s32.totalorder %s24, 0
      %p84 = por %p82, %p83
      %p85 = scmp.ne.s32.totalorder %s74, %s77
      %p86 = scmp.eq.s32.totalorder %s29, 1
      %p87 = por %p85, %p86
      %p88 = scmp.ne.s32.totalorder %s77, %s78
      %p89 = scmp.eq.s32.totalorder %s29, 0
      %p90 = por %p88, %p89
      %p91 = scmp.ne.s32.totalorder %s77, %s78
      %p92 = scmp.eq.s32.totalorder %s30, 1
      %p93 = por %p91, %p92
      %p95 = scmp.ne.s32.totalorder %s78, %s94
      %p96 = scmp.eq.s32.totalorder %s30, 0
      %p97 = por %p95, %p96
      %s99 = sadd.s32 %s98, 1
      %p102 = scmp.eq.s32.totalorder %s24, 1
      %p103 = scmp.ne.s32.totalorder %s98, %s100
      %p104 = scmp.eq.s32.totalorder %s24, 0
      %p105 = por %p103, %p104
      %p106 = scmp.ne.s32.totalorder %s98, %s100
      %p107 = scmp.eq.s32.totalorder %s29, 1
      %p108 = por %p106, %p107
      %p109 = scmp.ne.s32.totalorder %s100, %s101
      %p110 = scmp.eq.s32.totalorder %s29, 0
      %p111 = por %p109, %p110
      %p112 = scmp.ne.s32.totalorder %s100, %s101
      %p113 = scmp.eq.s32.totalorder %s30, 1
      %p114 = por %p112, %p113
      %p116 = scmp.ne.s32.totalorder %s101, %s115
      %p117 = scmp.eq.s32.totalorder %s30, 0
      %p118 = por %p116, %p117
      %s120 = sadd.s32 %s119, 1
      %p123 = scmp.eq.s32.totalorder %s24, 1
      %p124 = scmp.ne.s32.totalorder %s119, %s121
      %p125 = scmp.eq.s32.totalorder %s24, 0
      %p126 = por %p124, %p125
      %p127 = scmp.ne.s32.totalorder %s119, %s121
      %p128 = scmp.eq.s32.totalorder %s29, 1
      %p129 = por %p127, %p128
      %p130 = scmp.ne.s32.totalorder %s121, %s122
      %p131 = scmp.eq.s32.totalorder %s29, 0
      %p132 = por %p130, %p131
      %p133 = scmp.ne.s32.totalorder %s121, %s122
      %p134 = scmp.eq.s32.totalorder %s30, 1
      %p135 = por %p133, %p134
      %p137 = scmp.ne.s32.totalorder %s122, %s136
      %p138 = scmp.eq.s32.totalorder %s30, 0
      %p139 = por %p137, %p138
      %s141 = sadd.s32 %s140, 1
      %p144 = scmp.eq.s32.totalorder %s24, 1
      %p145 = scmp.ne.s32.totalorder %s140, %s142
      %p146 = scmp.eq.s32.totalorder %s24, 0
      %p147 = por %p145, %p146
      %p148 = scmp.ne.s32.totalorder %s140, %s142
      %p149 = scmp.eq.s32.totalorder %s29, 1
      %p150 = por %p148, %p149
      %p151 = scmp.ne.s32.totalorder %s142, %s143
      %p152 = scmp.eq.s32.totalorder %s29, 0
      %p153 = por %p151, %p152
      %p154 = scmp.ne.s32.totalorder %s142, %s143
      %p155 = scmp.eq.s32.totalorder %s30, 1
      %p156 = por %p154, %p155
      %p158 = scmp.ne.s32.totalorder %s143, %s157
      %p159 = scmp.eq.s32.totalorder %s30, 0
      %p160 = por %p158, %p159
      %s162 = sadd.s32 %s161, 1
      %p165 = scmp.eq.s32.totalorder %s24, 1
      %p166 = scmp.ne.s32.totalorder %s161, %s163
      %p167 = scmp.eq.s32.totalorder %s24, 0
      %p168 = por %p166, %p167
      %p169 = scmp.ne.s32.totalorder %s161, %s163
      %p170 = scmp.eq.s32.totalorder %s29, 1
      %p171 = por %p169, %p170
      %p172 = scmp.ne.s32.totalorder %s163, %s164
      %p173 = scmp.eq.s32.totalorder %s29, 0
      %p174 = por %p172, %p173
      %p175 = scmp.ne.s32.totalorder %s163, %s164
      %p176 = scmp.eq.s32.totalorder %s30, 1
      %p177 = por %p175, %p176
      %p179 = scmp.ne.s32.totalorder %s164, %s178
      %p180 = scmp.eq.s32.totalorder %s30, 0
      %p181 = por %p179, %p180
      %s183 = sadd.s32 %s182, 1
      %p186 = scmp.eq.s32.totalorder %s24, 1
      %p187 = scmp.ne.s32.totalorder %s182, %s184
      %p188 = scmp.eq.s32.totalorder %s24, 0
      %p189 = por %p187, %p188
      %p190 = scmp.ne.s32.totalorder %s182, %s184
      %p191 = scmp.eq.s32.totalorder %s29, 1
      %p192 = por %p190, %p191
      %p193 = scmp.ne.s32.totalorder %s184, %s185
      %p194 = scmp.eq.s32.totalorder %s29, 0
      %p195 = por %p193, %p194
      %p196 = scmp.ne.s32.totalorder %s184, %s185
      %p197 = scmp.eq.s32.totalorder %s30, 1
      %p198 = por %p196, %p197
      %p200 = scmp.ne.s32.totalorder %s185, %s199
      %p201 = scmp.eq.s32.totalorder %s30, 0
      %p202 = por %p200, %p201
      %s203 = ssub.s32 %s31, %s43
      %s204 = ssub.s32 %s32, %s39
      %s205 = sor.u32 %s203, %s204
      %p206 = scmp.eq.s32.totalorder %s205, 0
      %s208 = sadd.s32 %s207, 1
      %s209 = scalar_select %p206, %s207, %s208
      %p212 = pneg %p206
      %p213 = scmp.eq.s32.totalorder %s24, 1
      %p214 = por %p212, %p213
      %p215 = scmp.ne.s32.totalorder %s207, %s210
      %p216 = scmp.eq.s32.totalorder %s24, 0
      %p217 = por %p215, %p216
      %p218 = scmp.ne.s32.totalorder %s207, %s210
      %p219 = scmp.eq.s32.totalorder %s29, 1
      %p220 = por %p218, %p219
      %p221 = scmp.ne.s32.totalorder %s210, %s211
      %p222 = scmp.eq.s32.totalorder %s29, 0
      %p223 = por %p221, %p222
      %p224 = scmp.ne.s32.totalorder %s210, %s211
      %p225 = scmp.eq.s32.totalorder %s30, 1
      %p226 = por %p224, %p225
      %p228 = scmp.ne.s32.totalorder %s211, %s227
      %p229 = scmp.eq.s32.totalorder %s30, 0
      %p230 = por %p228, %p229
      %p231 = scmp.le.s32.totalorder 1, %s24
      %p232 = scmp.lt.s32.totalorder %s24, 3
      %p233 = pnand %p231, %p232
      %p234 = pneg %p233
      // Predicated region
      $region9: #{tpu_custom_call.1} parent=5 // pred_check
        _
      $region10: #{tpu_custom_call.1} parent=5 // pred_check_branch
        %236 = sbr.rel (%p233) target = $region12
      $region11: #{tpu_custom_call.1} parent=5 // pred_region
        %s237 = ssub.s32 %s24, 1
        // Predicated region
        $region13: #{tpu_custom_call.1} parent=11 // pred_check
          %p238 = pneg %p111
        $region14: #{tpu_custom_call.1} parent=11 // pred_check_branch
          %240 = sbr.rel (%p238) target = $region16
        $region15: #{tpu_custom_call.1} parent=11 // pred_region
          %s242 = ssub.s32 256, 256
          %243 = vsyncadd [#allocation8], %s242
          %s244 = sshll.u32 [#allocation9], 4
          %s245 = int_to_ptr.vmem [resolvable:$true] %s244
          %250 = dma.hbm_to_vmem [thread:$0]  %s2, 256, %s245, [#allocation8], 64, 64, 4
        $region16: #{tpu_custom_call.1} parent=11 // pred_fallthru
          _
        // Predicated region
        $region17: #{tpu_custom_call.1} parent=11 // pred_check
          %p251 = pneg %p132
        $region18: #{tpu_custom_call.1} parent=11 // pred_check_branch
          %253 = sbr.rel (%p251) target = $region20
        $region19: #{tpu_custom_call.1} parent=11 // pred_region
          %s255 = ssub.s32 256, 256
          %256 = vsyncadd [#allocation11], %s255
          %s257 = sshll.u32 [#allocation10], 4
          %s258 = int_to_ptr.vmem [resolvable:$true] %s257
          %263 = dma.hbm_to_vmem [thread:$0]  %s3, 256, %s258, [#allocation11], 64, 64, 4
        $region20: #{tpu_custom_call.1} parent=11 // pred_fallthru
          _
        // Predicated region
        $region21: #{tpu_custom_call.1} parent=11 // pred_check
          %p264 = pneg %p153
        $region22: #{tpu_custom_call.1} parent=11 // pred_check_branch
          %266 = sbr.rel (%p264) target = $region24
        $region23: #{tpu_custom_call.1} parent=11 // pred_region
          %s268 = ssub.s32 256, 256
          %269 = vsyncadd [#allocation11], %s268
          %s270 = sshll.u32 [#allocation12], 4
          %s271 = int_to_ptr.vmem [resolvable:$true] %s270
          %276 = dma.hbm_to_vmem [thread:$0]  %s4, 256, %s271, [#allocation11], 64, 64, 4
        $region24: #{tpu_custom_call.1} parent=11 // pred_fallthru
          _
        // Predicated region
        $region25: #{tpu_custom_call.1} parent=11 // pred_check
          %p277 = pneg %p174
        $region26: #{tpu_custom_call.1} parent=11 // pred_check_branch
          %279 = sbr.rel (%p277) target = $region28
        $region27: #{tpu_custom_call.1} parent=11 // pred_region
          %s281 = ssub.s32 256, 256
          %282 = vsyncadd [#allocation14], %s281
          %s283 = sshll.u32 [#allocation13], 4
          %s284 = int_to_ptr.vmem [resolvable:$true] %s283
          %289 = dma.hbm_to_vmem [thread:$0]  %s5, 256, %s284, [#allocation14], 64, 64, 4
        $region28: #{tpu_custom_call.1} parent=11 // pred_fallthru
          _
        // Predicated region
        $region29: #{tpu_custom_call.1} parent=11 // pred_check
          %p290 = pneg %p195
        $region30: #{tpu_custom_call.1} parent=11 // pred_check_branch
          %292 = sbr.rel (%p290) target = $region32
        $region31: #{tpu_custom_call.1} parent=11 // pred_region
          %s294 = ssub.s32 128, 128
          %295 = vsyncadd [#allocation14], %s294
          %s297 = sshll.u32 [#allocation15], 4
          %s298 = int_to_ptr.vmem [resolvable:$true] %s297
          %300 = dma.hbm_to_vmem [thread:$0]  %s6, 128, %s298, [#allocation14]
        $region32: #{tpu_custom_call.1} parent=11 // pred_fallthru
          _
      $region12: #{tpu_custom_call.1} parent=5 // pred_fallthru
        _
      %p301 = scmp.lt.s32.totalorder %s24, 2
      // Predicated region
      $region33: #{tpu_custom_call.1} parent=5 // pred_check
        %p302 = pneg %p301
      $region34: #{tpu_custom_call.1} parent=5 // pred_check_branch
        %304 = sbr.rel (%p302) target = $region36
      $region35: #{tpu_custom_call.1} parent=5 // pred_region
        // Predicated region
        $region37: #{tpu_custom_call.1} parent=35 // pred_check
          %p305 = pneg %p58
        $region38: #{tpu_custom_call.1} parent=35 // pred_check_branch
          %307 = sbr.rel (%p305) target = $region40
        $region39: #{tpu_custom_call.1} parent=35 // pred_region
          %s308 = sand.u32 %s48, 1
          %s309 = scalar_lea.sflag [#allocation5], %s308
          %s310 = sand.u32 %s48, 1
          %s311 = smul.addr %s310, 8
          %s312 = scalar_lea.vmem [#allocation4], %s311
          %s314 = ssub.s32 128, 128
          %315 = vsyncadd %s309, %s314
          %s316 = sadd.s32 %s32, %s31
          %s317 = smul.addr %s316, 128
          %s318 = scalar_lea.hbm %s0, %s317
          %s320 = sshll.u32 %s312, 4
          %s321 = int_to_ptr.vmem [resolvable:$true] %s320
          %323 = dma.hbm_to_vmem [thread:$0]  %s318, 128, %s321, %s309
        $region40: #{tpu_custom_call.1} parent=35 // pred_fallthru
          _
        // Predicated region
        $region41: #{tpu_custom_call.1} parent=35 // pred_check
          %p324 = pneg %p84
        $region42: #{tpu_custom_call.1} parent=35 // pred_check_branch
          %326 = sbr.rel (%p324) target = $region44
        $region43: #{tpu_custom_call.1} parent=35 // pred_region
          %s327 = sand.u32 %s24, 1
          %s328 = scalar_lea.sflag [#allocation8], %s327
          %s329 = sand.u32 %s74, 1
          %s330 = smul.addr %s329, 4
          %s331 = scalar_lea.vmem [#allocation7], %s330
          %s333 = ssub.s32 64, 64
          %334 = vsyncadd %s328, %s333
          %s335 = smul.addr %s31, 64
          %s336 = scalar_lea.hbm %s1, %s335
          %s338 = sshll.u32 %s331, 4
          %s339 = int_to_ptr.vmem [resolvable:$true] %s338
          %341 = dma.hbm_to_vmem [thread:$0]  %s336, 64, %s339, %s328
        $region44: #{tpu_custom_call.1} parent=35 // pred_fallthru
          _
      $region36: #{tpu_custom_call.1} parent=5 // pred_fallthru
        _
      %p342 = scmp.le.s32.totalorder 1, %s24
      %p343 = scmp.lt.s32.totalorder %s24, 3
      %p344 = pnand %p342, %p343
      %p345 = pneg %p344
      // Predicated region
      $region45: #{tpu_custom_call.1} parent=5 // pred_check
        _
      $region46: #{tpu_custom_call.1} parent=5 // pred_check_branch
        %347 = sbr.rel (%p344) target = $region48
      $region47: #{tpu_custom_call.1} parent=5 // pred_region
        %s348 = ssub.s32 %s24, 1
        %s349 = sand.u32 %s51, 1
        %s350 = scalar_lea.sflag [#allocation5], %s349
        %s351 = sand.u32 %s51, 1
        %s352 = smul.addr %s351, 8
        %s353 = scalar_lea.vmem [#allocation4], %s352
        // Predicated region
        $region49: #{tpu_custom_call.1} parent=47 // pred_check
          %p354 = pneg %p64
        $region50: #{tpu_custom_call.1} parent=47 // pred_check_branch
          %356 = sbr.rel (%p354) target = $region52
        $region51: #{tpu_custom_call.1} parent=47 // pred_region
          %357 = dma.done %s350, 128
        $region52: #{tpu_custom_call.1} parent=47 // pred_fallthru
          _
        %s358 = sand.u32 %s29, 1
        %s359 = scalar_lea.sflag [#allocation8], %s358
        %s360 = sand.u32 %s77, 1
        %s361 = smul.addr %s360, 4
        %s362 = scalar_lea.vmem [#allocation7], %s361
        // Predicated region
        $region53: #{tpu_custom_call.1} parent=47 // pred_check
          %p363 = pneg %p90
        $region54: #{tpu_custom_call.1} parent=47 // pred_check_branch
          %365 = sbr.rel (%p363) target = $region56
        $region55: #{tpu_custom_call.1} parent=47 // pred_region
          %366 = dma.done %s359, 64
        $region56: #{tpu_custom_call.1} parent=47 // pred_fallthru
          _
        // Predicated region
        $region57: #{tpu_custom_call.1} parent=47 // pred_check
          %p367 = pneg %p111
        $region58: #{tpu_custom_call.1} parent=47 // pred_check_branch
          %369 = sbr.rel (%p367) target = $region60
        $region59: #{tpu_custom_call.1} parent=47 // pred_region
          %370 = dma.done [#allocation8], 256
        $region60: #{tpu_custom_call.1} parent=47 // pred_fallthru
          _
        // Predicated region
        $region61: #{tpu_custom_call.1} parent=47 // pred_check
          %p371 = pneg %p132
        $region62: #{tpu_custom_call.1} parent=47 // pred_check_branch
          %373 = sbr.rel (%p371) target = $region64
        $region63: #{tpu_custom_call.1} parent=47 // pred_region
          %374 = dma.done [#allocation11], 256
        $region64: #{tpu_custom_call.1} parent=47 // pred_fallthru
          _
        // Predicated region
        $region65: #{tpu_custom_call.1} parent=47 // pred_check
          %p375 = pneg %p153
        $region66: #{tpu_custom_call.1} parent=47 // pred_check_branch
          %377 = sbr.rel (%p375) target = $region68
        $region67: #{tpu_custom_call.1} parent=47 // pred_region
          %378 = dma.done [#allocation11], 256
        $region68: #{tpu_custom_call.1} parent=47 // pred_fallthru
          _
        // Predicated region
        $region69: #{tpu_custom_call.1} parent=47 // pred_check
          %p379 = pneg %p174
        $region70: #{tpu_custom_call.1} parent=47 // pred_check_branch
          %381 = sbr.rel (%p379) target = $region72
        $region71: #{tpu_custom_call.1} parent=47 // pred_region
          %382 = dma.done [#allocation14], 256
        $region72: #{tpu_custom_call.1} parent=47 // pred_fallthru
          _
        // Predicated region
        $region73: #{tpu_custom_call.1} parent=47 // pred_check
          %p383 = pneg %p195
        $region74: #{tpu_custom_call.1} parent=47 // pred_check_branch
          %385 = sbr.rel (%p383) target = $region76
        $region75: #{tpu_custom_call.1} parent=47 // pred_region
          %386 = dma.done [#allocation14], 128
        $region76: #{tpu_custom_call.1} parent=47 // pred_fallthru
          _
        %s387 = sand.u32 %s51, 1
        %s388 = scalar_lea.sflag [#allocation5], %s387
        %s389 = sand.u32 %s51, 1
        %s390 = smul.addr %s389, 8
        %s391 = scalar_lea.vmem [#allocation4], %s390
        %p392 = pneg %p64
        %p393 = pneg %p61
        %s394 = sand.u32 %s29, 1
        %s395 = scalar_lea.sflag [#allocation8], %s394
        %s396 = sand.u32 %s77, 1
        %s397 = smul.addr %s396, 4
        %s398 = scalar_lea.vmem [#allocation7], %s397
        %p399 = pneg %p90
        %p400 = pneg %p87
        %p401 = pneg %p111
        %p402 = pneg %p108
        %p403 = pneg %p132
        %p404 = pneg %p129
        %p405 = pneg %p153
        %p406 = pneg %p150
        %p407 = pneg %p174
        %p408 = pneg %p171
        %p409 = pneg %p195
        %p410 = pneg %p192
        %p411 = pneg %p223
        %p412 = pneg %p220
        %s413 = sand.u32 %s210, 1
        %s414 = scalar_lea.sflag [#allocation6], %s413
        %s415 = sand.u32 %s210, 1
        %s416 = smul.addr %s415, 8
        %s417 = scalar_lea.vmem [#allocation16], %s416
        %v419 = vld [vmem:[#allocation15] sm:$0x1]
        %v420 = vld [vmem:[#allocation15 + $0x1] sm:$0x1]
        %v421 = vld [vmem:[#allocation15 + $0x2] sm:$0x1]
        %v422 = vld [vmem:[#allocation15 + $0x3] sm:$0x1]
        %v423 = vld [vmem:[#allocation15 + $0x4] sm:$0x1]
        %v424 = vld [vmem:[#allocation15 + $0x5] sm:$0x1]
        %p425 = scmp.eq.s32.totalorder %s34, 0
        // Predicated region
        $region77: #{tpu_custom_call.1} parent=47 // pred_check
          %p426 = pneg %p425
        $region78: #{tpu_custom_call.1} parent=47 // pred_check_branch
          %428 = sbr.rel (%p426) target = $region80
        $region79: #{tpu_custom_call.1} parent=47 // pred_region
          %v429 = vld [vmem:[%s362] sm:$0xf]
          %v430 = vld [vmem:[#allocation10] sm:$0xf]
          %v431 = vld [vmem:[#allocation10 + $0x4] sm:$0xf]
          %v432 = vld [vmem:[#allocation10 + $0x8] sm:$0xf]
          %v433 = vld [vmem:[#allocation10 + $0xc] sm:$0xf]
          %v434 = vlaneseq
          %v435 = vshrl.u32 %v434, 7
          %v436 = vsub.s32 0, %v435
          %v437 = vrot.slane %v420, %v436
          %v442 = vunpack.c.l.b16 %v430
          %v443 = vunpack.c.l.b16 %v431
          %v444 = vunpack.c.l.b16 %v432
          %v445 = vunpack.c.l.b16 %v433
          %v446 = vpack.c.b16 %v443, %v442
          %v447 = vpack.c.b16 %v445, %v444
          %vm450 = vcmask 261120
          %v452 = vsel %vm450, %v429, 0
          %454 = vmatprep.subr.bf16.mxu0 0
          %455 = vmatpush1.bf16.msra.mxu0 %v446
          %456 = vmatprep.subr.bf16.mxu0 0
          %457 = vmatpush1.bf16.msra.mxu0 %v447
          %458 = vmatprep.subr.bf16.mxu0 0
          %459 = vmatpush1.bf16.msra.mxu0 0
          %460 = vmatprep.subr.bf16.mxu0 0
          %461 = vmatpush1.bf16.msra.mxu0 0
          %462 = vmatprep.subr.bf16.mxu0 0
          %463 = vmatpush1.bf16.msra.mxu0 0
          %464 = vmatprep.subr.bf16.mxu0 0
          %465 = vmatpush1.bf16.msra.mxu0 0
          %466 = vmatprep.subr.bf16.mxu0 0
          %467 = vmatpush1.bf16.msra.mxu0 0
          %468 = vmatprep.subr.bf16.mxu0 0
          %469 = vmatpush1.bf16.msra.mxu0 0
          %470 = vmatprep.subr.bf16.mxu0 0
          %471 = vmatpush1.bf16.msra.mxu0 0
          %472 = vmatprep.subr.bf16.mxu0 0
          %473 = vmatpush1.bf16.msra.mxu0 0
          %474 = vmatprep.subr.bf16.mxu0 0
          %475 = vmatpush1.bf16.msra.mxu0 0
          %476 = vmatprep.subr.bf16.mxu0 0
          %477 = vmatpush1.bf16.msra.mxu0 0
          %478 = vmatprep.subr.bf16.mxu0 0
          %479 = vmatpush1.bf16.msra.mxu0 0
          %480 = vmatprep.subr.bf16.mxu0 0
          %481 = vmatpush1.bf16.msra.mxu0 0
          %482 = vmatprep.subr.bf16.mxu0 0
          %483 = vmatpush1.bf16.msra.mxu0 0
          %484 = vmatprep.subr.bf16.mxu0 0
          %485 = vmatpush1.bf16.msra.mxu0 0
          %486 = vmatprep.mubr.bf16.mxu0 0
          %487 = vmatmul.mubr.bf16.gmra.mrb[0].mxu0 %v452
          %v488 = vpop.f32.mrb[0].mxu0
          %v489 = vadd.f32 %v437, %v488
          %v490 = vpop.f32.mrb[0].mxu0
          %v491 = vpop.f32.mrb[0].mxu0
          %v492 = vpop.f32.mrb[0].mxu0
          %493 = vdwg.mxu0
          %v494 = vld [vmem:[#allocation12] sm:$0xf]
          %v495 = vld [vmem:[#allocation12 + $0x4] sm:$0xf]
          %v496 = vld [vmem:[#allocation12 + $0x8] sm:$0xf]
          %v497 = vld [vmem:[#allocation12 + $0xc] sm:$0xf]
          %v498 = vlaneseq
          %v499 = vshrl.u32 %v498, 7
          %v500 = vsub.s32 0, %v499
          %v501 = vrot.slane %v421, %v500
          %v506 = vunpack.c.l.b16 %v494
          %v507 = vunpack.c.l.b16 %v495
          %v508 = vunpack.c.l.b16 %v496
          %v509 = vunpack.c.l.b16 %v497
          %v510 = vpack.c.b16 %v507, %v506
          %v511 = vpack.c.b16 %v509, %v508
          %514 = vmatprep.subr.bf16.mxu0 0
          %515 = vmatpush1.bf16.msra.mxu0 %v510
          %516 = vmatprep.subr.bf16.mxu0 0
          %517 = vmatpush1.bf16.msra.mxu0 %v511
          %518 = vmatprep.subr.bf16.mxu0 0
          %519 = vmatpush1.bf16.msra.mxu0 0
          %520 = vmatprep.subr.bf16.mxu0 0
          %521 = vmatpush1.bf16.msra.mxu0 0
          %522 = vmatprep.subr.bf16.mxu0 0
          %523 = vmatpush1.bf16.msra.mxu0 0
          %524 = vmatprep.subr.bf16.mxu0 0
          %525 = vmatpush1.bf16.msra.mxu0 0
          %526 = vmatprep.subr.bf16.mxu0 0
          %527 = vmatpush1.bf16.msra.mxu0 0
          %528 = vmatprep.subr.bf16.mxu0 0
          %529 = vmatpush1.bf16.msra.mxu0 0
          %530 = vmatprep.subr.bf16.mxu0 0
          %531 = vmatpush1.bf16.msra.mxu0 0
          %532 = vmatprep.subr.bf16.mxu0 0
          %533 = vmatpush1.bf16.msra.mxu0 0
          %534 = vmatprep.subr.bf16.mxu0 0
          %535 = vmatpush1.bf16.msra.mxu0 0
          %536 = vmatprep.subr.bf16.mxu0 0
          %537 = vmatpush1.bf16.msra.mxu0 0
          %538 = vmatprep.subr.bf16.mxu0 0
          %539 = vmatpush1.bf16.msra.mxu0 0
          %540 = vmatprep.subr.bf16.mxu0 0
          %541 = vmatpush1.bf16.msra.mxu0 0
          %542 = vmatprep.subr.bf16.mxu0 0
          %543 = vmatpush1.bf16.msra.mxu0 0
          %544 = vmatprep.subr.bf16.mxu0 0
          %545 = vmatpush1.bf16.msra.mxu0 0
          %546 = vmatprep.mubr.bf16.mxu0 0
          %547 = vmatmul.mubr.bf16.gmra.mrb[0].mxu0 %v452
          %v548 = vpop.f32.mrb[0].mxu0
          %v549 = vadd.f32 %v501, %v548
          %v550 = vpop.f32.mrb[0].mxu0
          %v551 = vpop.f32.mrb[0].mxu0
          %v552 = vpop.f32.mrb[0].mxu0
          %553 = vdwg.mxu0
          %v554 = vpack.c.bf16 %v489, %v489
          %556 = vrot.lane.b32.xlu0 %v554, 120
          %v557 = vpop.permute.xlu0 %556
          %558 = vrot.lane.b32.xlu0 %v554, 112
          %v559 = vpop.permute.xlu0 %558
          %560 = vrot.lane.b32.xlu0 %v554, 104
          %v561 = vpop.permute.xlu0 %560
          %v563 = vunpack.c.l.s4 1983009808
          %v564 = vunpack.c.0.s8 %v563
          %v565 = vlaneseq
          %v566 = vshrl.u32 %v565, 7
          %v567 = vsub.s32 %v564, %v566
          %v568 = vrot.slane %v554, %v567
          %v571 = vunpack.c.l.s4 1983009808
          %v572 = vunpack.c.0.s8 %v571
          %v573 = vlaneseq
          %v574 = vshrl.u32 %v573, 7
          %v575 = vsub.s32 %v572, %v574
          %v576 = vrot.slane %v559, %v575
          %v577 = vcombine.low %v568, %v576
          %v578 = vcombine.high %v568, %v576
          %v580 = vunpack.c.l.s4 1934713408
          %v581 = vunpack.c.0.s8 %v580
          %v582 = vlaneseq
          %v583 = vshrl.u32 %v582, 7
          %v584 = vsub.s32 %v581, %v583
          %v585 = vrot.slane %v577, %v584
          %v587 = vunpack.c.l.s4 1934713408
          %v588 = vunpack.c.0.s8 %v587
          %v589 = vlaneseq
          %v590 = vshrl.u32 %v589, 7
          %v591 = vsub.s32 %v588, %v590
          %v592 = vrot.slane %v578, %v591
          %v593 = vcombine.high %v585, 0
          %v594 = vcombine.high %v592, 0
          %v597 = vunpack.c.l.s4 1983009808
          %v598 = vunpack.c.0.s8 %v597
          %v599 = vlaneseq
          %v600 = vshrl.u32 %v599, 7
          %v601 = vsub.s32 %v598, %v600
          %v602 = vrot.slane %v557, %v601
          %v605 = vunpack.c.l.s4 1983009808
          %v606 = vunpack.c.0.s8 %v605
          %v607 = vlaneseq
          %v608 = vshrl.u32 %v607, 7
          %v609 = vsub.s32 %v606, %v608
          %v610 = vrot.slane %v561, %v609
          %v611 = vcombine.low %v602, %v610
          %v612 = vcombine.high %v602, %v610
          %v614 = vunpack.c.l.s4 1934713408
          %v615 = vunpack.c.0.s8 %v614
          %v616 = vlaneseq
          %v617 = vshrl.u32 %v616, 7
          %v618 = vsub.s32 %v615, %v617
          %v619 = vrot.slane %v611, %v618
          %v621 = vunpack.c.l.s4 1934713408
          %v622 = vunpack.c.0.s8 %v621
          %v623 = vlaneseq
          %v624 = vshrl.u32 %v623, 7
          %v625 = vsub.s32 %v622, %v624
          %v626 = vrot.slane %v612, %v625
          %v627 = vcombine.high %v619, 0
          %v628 = vcombine.high %v626, 0
          %v631 = vpack.i.b16 %v619, %v585
          %v633 = vshrl.u32 %v585, 16
          %v634 = vshrl.u32 %v619, 16
          %v635 = vpack.i.b16 %v634, %v633
          %v639 = vpack.i.b16 %v627, %v593
          %v641 = vshrl.u32 %v593, 16
          %v642 = vshrl.u32 %v627, 16
          %v643 = vpack.i.b16 %v642, %v641
          %v647 = vpack.i.b16 %v626, %v592
          %v649 = vshrl.u32 %v592, 16
          %v650 = vshrl.u32 %v626, 16
          %v651 = vpack.i.b16 %v650, %v649
          %v655 = vpack.i.b16 %v628, %v594
          %v657 = vshrl.u32 %v594, 16
          %v658 = vshrl.u32 %v628, 16
          %v659 = vpack.i.b16 %v658, %v657
          %v661 = vcombine.low %v631, %v647
          %v663 = vunpack.c.l.s4 1983009808
          %v664 = vunpack.c.0.s8 %v663
          %v665 = vlaneseq
          %v666 = vshrl.u32 %v665, 7
          %v667 = vsub.s32 %v664, %v666
          %v668 = vrot.slane %v661, %v667
          %v669 = vcombine.low %v639, %v655
          %v671 = vunpack.c.l.s4 1983009808
          %v672 = vunpack.c.0.s8 %v671
          %v673 = vlaneseq
          %v674 = vshrl.u32 %v673, 7
          %v675 = vsub.s32 %v672, %v674
          %v676 = vrot.slane %v669, %v675
          %v677 = vcombine.low %v668, %v676
          %v679 = vunpack.c.l.s4 1934713408
          %v680 = vunpack.c.0.s8 %v679
          %v681 = vlaneseq
          %v682 = vshrl.u32 %v681, 7
          %v683 = vsub.s32 %v680, %v682
          %v684 = vrot.slane %v677, %v683
          %v685 = vcombine.high %v684, 0
          %v686 = vcombine.low %v635, %v651
          %v688 = vunpack.c.l.s4 1983009808
          %v689 = vunpack.c.0.s8 %v688
          %v690 = vlaneseq
          %v691 = vshrl.u32 %v690, 7
          %v692 = vsub.s32 %v689, %v691
          %v693 = vrot.slane %v686, %v692
          %v694 = vcombine.low %v643, %v659
          %v696 = vunpack.c.l.s4 1983009808
          %v697 = vunpack.c.0.s8 %v696
          %v698 = vlaneseq
          %v699 = vshrl.u32 %v698, 7
          %v700 = vsub.s32 %v697, %v699
          %v701 = vrot.slane %v694, %v700
          %v702 = vcombine.low %v693, %v701
          %v704 = vunpack.c.l.s4 1934713408
          %v705 = vunpack.c.0.s8 %v704
          %v706 = vlaneseq
          %v707 = vshrl.u32 %v706, 7
          %v708 = vsub.s32 %v705, %v707
          %v709 = vrot.slane %v702, %v708
          %v710 = vcombine.high %v709, 0
          %v713 = vpack.i.b16 %v709, %v684
          %v715 = vshrl.u32 %v684, 16
          %v716 = vshrl.u32 %v709, 16
          %v717 = vpack.i.b16 %v716, %v715
          %v721 = vpack.i.b16 %v710, %v685
          %v723 = vshrl.u32 %v685, 16
          %v724 = vshrl.u32 %v710, 16
          %v725 = vpack.i.b16 %v724, %v723
          %v727 = vpack.c.bf16 %v549, %v549
          %729 = vrot.lane.b32.xlu0 %v727, 120
          %v730 = vpop.permute.xlu0 %729
          %731 = vrot.lane.b32.xlu0 %v727, 112
          %v732 = vpop.permute.xlu0 %731
          %733 = vrot.lane.b32.xlu0 %v727, 104
          %v734 = vpop.permute.xlu0 %733
          %v736 = vunpack.c.l.s4 1983009808
          %v737 = vunpack.c.0.s8 %v736
          %v738 = vlaneseq
          %v739 = vshrl.u32 %v738, 7
          %v740 = vsub.s32 %v737, %v739
          %v741 = vrot.slane %v727, %v740
          %v744 = vunpack.c.l.s4 1983009808
          %v745 = vunpack.c.0.s8 %v744
          %v746 = vlaneseq
          %v747 = vshrl.u32 %v746, 7
          %v748 = vsub.s32 %v745, %v747
          %v749 = vrot.slane %v732, %v748
          %v750 = vcombine.low %v741, %v749
          %v751 = vcombine.high %v741, %v749
          %v753 = vunpack.c.l.s4 1934713408
          %v754 = vunpack.c.0.s8 %v753
          %v755 = vlaneseq
          %v756 = vshrl.u32 %v755, 7
          %v757 = vsub.s32 %v754, %v756
          %v758 = vrot.slane %v750, %v757
          %v760 = vunpack.c.l.s4 1934713408
          %v761 = vunpack.c.0.s8 %v760
          %v762 = vlaneseq
          %v763 = vshrl.u32 %v762, 7
          %v764 = vsub.s32 %v761, %v763
          %v765 = vrot.slane %v751, %v764
          %v766 = vcombine.high %v758, 0
          %v767 = vcombine.high %v765, 0
          %v770 = vunpack.c.l.s4 1983009808
          %v771 = vunpack.c.0.s8 %v770
          %v772 = vlaneseq
          %v773 = vshrl.u32 %v772, 7
          %v774 = vsub.s32 %v771, %v773
          %v775 = vrot.slane %v730, %v774
          %v778 = vunpack.c.l.s4 1983009808
          %v779 = vunpack.c.0.s8 %v778
          %v780 = vlaneseq
          %v781 = vshrl.u32 %v780, 7
          %v782 = vsub.s32 %v779, %v781
          %v783 = vrot.slane %v734, %v782
          %v784 = vcombine.low %v775, %v783
          %v785 = vcombine.high %v775, %v783
          %v787 = vunpack.c.l.s4 1934713408
          %v788 = vunpack.c.0.s8 %v787
          %v789 = vlaneseq
          %v790 = vshrl.u32 %v789, 7
          %v791 = vsub.s32 %v788, %v790
          %v792 = vrot.slane %v784, %v791
          %v794 = vunpack.c.l.s4 1934713408
          %v795 = vunpack.c.0.s8 %v794
          %v796 = vlaneseq
          %v797 = vshrl.u32 %v796, 7
          %v798 = vsub.s32 %v795, %v797
          %v799 = vrot.slane %v785, %v798
          %v800 = vcombine.high %v792, 0
          %v801 = vcombine.high %v799, 0
          %v804 = vpack.i.b16 %v792, %v758
          %v806 = vshrl.u32 %v758, 16
          %v807 = vshrl.u32 %v792, 16
          %v808 = vpack.i.b16 %v807, %v806
          %v812 = vpack.i.b16 %v800, %v766
          %v814 = vshrl.u32 %v766, 16
          %v815 = vshrl.u32 %v800, 16
          %v816 = vpack.i.b16 %v815, %v814
          %v820 = vpack.i.b16 %v799, %v765
          %v822 = vshrl.u32 %v765, 16
          %v823 = vshrl.u32 %v799, 16
          %v824 = vpack.i.b16 %v823, %v822
          %v828 = vpack.i.b16 %v801, %v767
          %v830 = vshrl.u32 %v767, 16
          %v831 = vshrl.u32 %v801, 16
          %v832 = vpack.i.b16 %v831, %v830
          %v834 = vcombine.low %v804, %v820
          %v836 = vunpack.c.l.s4 1983009808
          %v837 = vunpack.c.0.s8 %v836
          %v838 = vlaneseq
          %v839 = vshrl.u32 %v838, 7
          %v840 = vsub.s32 %v837, %v839
          %v841 = vrot.slane %v834, %v840
          %v842 = vcombine.low %v812, %v828
          %v844 = vunpack.c.l.s4 1983009808
          %v845 = vunpack.c.0.s8 %v844
          %v846 = vlaneseq
          %v847 = vshrl.u32 %v846, 7
          %v848 = vsub.s32 %v845, %v847
          %v849 = vrot.slane %v842, %v848
          %v850 = vcombine.low %v841, %v849
          %v852 = vunpack.c.l.s4 1934713408
          %v853 = vunpack.c.0.s8 %v852
          %v854 = vlaneseq
          %v855 = vshrl.u32 %v854, 7
          %v856 = vsub.s32 %v853, %v855
          %v857 = vrot.slane %v850, %v856
          %v858 = vcombine.high %v857, 0
          %v859 = vcombine.low %v808, %v824
          %v861 = vunpack.c.l.s4 1983009808
          %v862 = vunpack.c.0.s8 %v861
          %v863 = vlaneseq
          %v864 = vshrl.u32 %v863, 7
          %v865 = vsub.s32 %v862, %v864
          %v866 = vrot.slane %v859, %v865
          %v867 = vcombine.low %v816, %v832
          %v869 = vunpack.c.l.s4 1983009808
          %v870 = vunpack.c.0.s8 %v869
          %v871 = vlaneseq
          %v872 = vshrl.u32 %v871, 7
          %v873 = vsub.s32 %v870, %v872
          %v874 = vrot.slane %v867, %v873
          %v875 = vcombine.low %v866, %v874
          %v877 = vunpack.c.l.s4 1934713408
          %v878 = vunpack.c.0.s8 %v877
          %v879 = vlaneseq
          %v880 = vshrl.u32 %v879, 7
          %v881 = vsub.s32 %v878, %v880
          %v882 = vrot.slane %v875, %v881
          %v883 = vcombine.high %v882, 0
          %v886 = vpack.i.b16 %v882, %v857
          %v888 = vshrl.u32 %v857, 16
          %v889 = vshrl.u32 %v882, 16
          %v890 = vpack.i.b16 %v889, %v888
          %v894 = vpack.i.b16 %v883, %v858
          %v896 = vshrl.u32 %v858, 16
          %v897 = vshrl.u32 %v883, 16
          %v898 = vpack.i.b16 %v897, %v896
          %vm900 = vcmask 60416
          %901 = vst.msk [vmem:[#allocation2] sm:$0xf] %vm900, %v713
          %902 = vst.msk [vmem:[#allocation2 + $0x4] sm:$0xf] %vm900, %v717
          %903 = vst.msk [vmem:[#allocation2 + $0x8] sm:$0xf] %vm900, %v721
          %904 = vst.msk [vmem:[#allocation2 + $0xc] sm:$0xf] %vm900, %v725
          %905 = vst.msk [vmem:[#allocation3] sm:$0xf] %vm900, %v886
          %906 = vst.msk [vmem:[#allocation3 + $0x4] sm:$0xf] %vm900, %v890
          %907 = vst.msk [vmem:[#allocation3 + $0x8] sm:$0xf] %vm900, %v894
          %908 = vst.msk [vmem:[#allocation3 + $0xc] sm:$0xf] %vm900, %v898
        $region80: #{tpu_custom_call.1} parent=47 // pred_fallthru
          _
        %v909 = vld [vmem:[%s353] sm:$0xff]
        %v910 = vpack.c.bf16 %v909, %v909
        %v911 = vld [vmem:[#allocation9] sm:$0xf]
        %v912 = vld [vmem:[#allocation9 + $0x4] sm:$0xf]
        %v913 = vld [vmem:[#allocation9 + $0x8] sm:$0xf]
        %v914 = vld [vmem:[#allocation9 + $0xc] sm:$0xf]
        %v915 = vlaneseq
        %v916 = vshrl.u32 %v915, 7
        %v917 = vsub.s32 0, %v916
        %v918 = vrot.slane %v419, %v917
        %v923 = vunpack.c.l.b16 %v911
        %v924 = vunpack.c.l.b16 %v912
        %v925 = vunpack.c.l.b16 %v913
        %v926 = vunpack.c.l.b16 %v914
        %v927 = vpack.c.b16 %v924, %v923
        %v928 = vpack.c.b16 %v926, %v925
        %vm931 = vcmask 261120
        %v933 = vsel %vm931, %v910, 0
        %935 = vmatprep.subr.bf16.mxu0 0
        %936 = vmatpush1.bf16.msra.mxu0 %v927
        %937 = vmatprep.subr.bf16.mxu0 0
        %938 = vmatpush1.bf16.msra.mxu0 %v928
        %939 = vmatprep.subr.bf16.mxu0 0
        %940 = vmatpush1.bf16.msra.mxu0 0
        %941 = vmatprep.subr.bf16.mxu0 0
        %942 = vmatpush1.bf16.msra.mxu0 0
        %943 = vmatprep.subr.bf16.mxu0 0
        %944 = vmatpush1.bf16.msra.mxu0 0
        %945 = vmatprep.subr.bf16.mxu0 0
        %946 = vmatpush1.bf16.msra.mxu0 0
        %947 = vmatprep.subr.bf16.mxu0 0
        %948 = vmatpush1.bf16.msra.mxu0 0
        %949 = vmatprep.subr.bf16.mxu0 0
        %950 = vmatpush1.bf16.msra.mxu0 0
        %951 = vmatprep.subr.bf16.mxu0 0
        %952 = vmatpush1.bf16.msra.mxu0 0
        %953 = vmatprep.subr.bf16.mxu0 0
        %954 = vmatpush1.bf16.msra.mxu0 0
        %955 = vmatprep.subr.bf16.mxu0 0
        %956 = vmatpush1.bf16.msra.mxu0 0
        %957 = vmatprep.subr.bf16.mxu0 0
        %958 = vmatpush1.bf16.msra.mxu0 0
        %959 = vmatprep.subr.bf16.mxu0 0
        %960 = vmatpush1.bf16.msra.mxu0 0
        %961 = vmatprep.subr.bf16.mxu0 0
        %962 = vmatpush1.bf16.msra.mxu0 0
        %963 = vmatprep.subr.bf16.mxu0 0
        %964 = vmatpush1.bf16.msra.mxu0 0
        %965 = vmatprep.subr.bf16.mxu0 0
        %966 = vmatpush1.bf16.msra.mxu0 0
        %967 = vmatprep.mubr.bf16.mxu0 0
        %968 = vmatmul.mubr.bf16.gmra.mrb[0].mxu0 %v933
        %v969 = vpop.f32.mrb[0].mxu0
        %v970 = vadd.f32 %v918, %v969
        %v971 = vpop.f32.mrb[0].mxu0
        %v972 = vpop.f32.mrb[0].mxu0
        %v973 = vpop.f32.mrb[0].mxu0
        %974 = vdwg.mxu0
        %v975 = vmul.f32 %v970, 0.35355338
        %977 = vrot.lane.b32.xlu0 %v975, 120
        %v978 = vpop.permute.xlu0 %977
        %980 = vrot.lane.b32.xlu0 %v975, 112
        %v981 = vpop.permute.xlu0 %980
        %983 = vrot.lane.b32.xlu0 %v975, 104
        %v984 = vpop.permute.xlu0 %983
        %v986 = vcombine.low %v975, %v981
        %v987 = vcombine.high %v975, %v981
        %v989 = vunpack.c.l.s4 1983009808
        %v990 = vunpack.c.0.s8 %v989
        %v991 = vlaneseq
        %v992 = vshrl.u32 %v991, 7
        %v993 = vsub.s32 %v990, %v992
        %v994 = vrot.slane %v986, %v993
        %v996 = vunpack.c.l.s4 1983009808
        %v997 = vunpack.c.0.s8 %v996
        %v998 = vlaneseq
        %v999 = vshrl.u32 %v998, 7
        %v1000 = vsub.s32 %v997, %v999
        %v1001 = vrot.slane %v987, %v1000
        %v1002 = vcombine.low %v978, %v984
        %v1003 = vcombine.high %v978, %v984
        %v1005 = vunpack.c.l.s4 1983009808
        %v1006 = vunpack.c.0.s8 %v1005
        %v1007 = vlaneseq
        %v1008 = vshrl.u32 %v1007, 7
        %v1009 = vsub.s32 %v1006, %v1008
        %v1010 = vrot.slane %v1002, %v1009
        %v1012 = vunpack.c.l.s4 1983009808
        %v1013 = vunpack.c.0.s8 %v1012
        %v1014 = vlaneseq
        %v1015 = vshrl.u32 %v1014, 7
        %v1016 = vsub.s32 %v1013, %v1015
        %v1017 = vrot.slane %v1003, %v1016
        %v1018 = vcombine.low %v994, %v1010
        %v1019 = vcombine.high %v994, %v1010
        %v1021 = vunpack.c.l.s4 1934713408
        %v1022 = vunpack.c.0.s8 %v1021
        %v1023 = vlaneseq
        %v1024 = vshrl.u32 %v1023, 7
        %v1025 = vsub.s32 %v1022, %v1024
        %v1026 = vrot.slane %v1018, %v1025
        %v1028 = vunpack.c.l.s4 1934713408
        %v1029 = vunpack.c.0.s8 %v1028
        %v1030 = vlaneseq
        %v1031 = vshrl.u32 %v1030, 7
        %v1032 = vsub.s32 %v1029, %v1031
        %v1033 = vrot.slane %v1019, %v1032
        %v1034 = vcombine.low %v1001, %v1017
        %v1035 = vcombine.high %v1001, %v1017
        %v1037 = vunpack.c.l.s4 1934713408
        %v1038 = vunpack.c.0.s8 %v1037
        %v1039 = vlaneseq
        %v1040 = vshrl.u32 %v1039, 7
        %v1041 = vsub.s32 %v1038, %v1040
        %v1042 = vrot.slane %v1034, %v1041
        %v1044 = vunpack.c.l.s4 1934713408
        %v1045 = vunpack.c.0.s8 %v1044
        %v1046 = vlaneseq
        %v1047 = vshrl.u32 %v1046, 7
        %v1048 = vsub.s32 %v1045, %v1047
        %v1049 = vrot.slane %v1035, %v1048
        %v1050 = vcombine.high %v1026, 0.0
        %v1051 = vcombine.high %v1033, 0.0
        %v1052 = vcombine.high %v1042, 0.0
        %v1053 = vcombine.high %v1049, 0.0
        %v1054 = vcombine.low %v1026, %v1033
        %v1056 = vunpack.c.l.s4 1983009808
        %v1057 = vunpack.c.0.s8 %v1056
        %v1058 = vlaneseq
        %v1059 = vshrl.u32 %v1058, 7
        %v1060 = vsub.s32 %v1057, %v1059
        %v1061 = vrot.slane %v1054, %v1060
        %v1062 = vcombine.low %v1050, %v1051
        %v1064 = vunpack.c.l.s4 1983009808
        %v1065 = vunpack.c.0.s8 %v1064
        %v1066 = vlaneseq
        %v1067 = vshrl.u32 %v1066, 7
        %v1068 = vsub.s32 %v1065, %v1067
        %v1069 = vrot.slane %v1062, %v1068
        %v1070 = vcombine.low %v1042, %v1049
        %v1072 = vunpack.c.l.s4 1983009808
        %v1073 = vunpack.c.0.s8 %v1072
        %v1074 = vlaneseq
        %v1075 = vshrl.u32 %v1074, 7
        %v1076 = vsub.s32 %v1073, %v1075
        %v1077 = vrot.slane %v1070, %v1076
        %v1078 = vcombine.low %v1052, %v1053
        %v1080 = vunpack.c.l.s4 1983009808
        %v1081 = vunpack.c.0.s8 %v1080
        %v1082 = vlaneseq
        %v1083 = vshrl.u32 %v1082, 7
        %v1084 = vsub.s32 %v1081, %v1083
        %v1085 = vrot.slane %v1078, %v1084
        %v1086 = vcombine.low %v1061, %v1069
        %v1087 = vcombine.high %v1061, %v1069
        %v1089 = vunpack.c.l.s4 1934713408
        %v1090 = vunpack.c.0.s8 %v1089
        %v1091 = vlaneseq
        %v1092 = vshrl.u32 %v1091, 7
        %v1093 = vsub.s32 %v1090, %v1092
        %v1094 = vrot.slane %v1086, %v1093
        %v1096 = vunpack.c.l.s4 1934713408
        %v1097 = vunpack.c.0.s8 %v1096
        %v1098 = vlaneseq
        %v1099 = vshrl.u32 %v1098, 7
        %v1100 = vsub.s32 %v1097, %v1099
        %v1101 = vrot.slane %v1087, %v1100
        %v1102 = vcombine.low %v1077, %v1085
        %v1103 = vcombine.high %v1077, %v1085
        %v1105 = vunpack.c.l.s4 1934713408
        %v1106 = vunpack.c.0.s8 %v1105
        %v1107 = vlaneseq
        %v1108 = vshrl.u32 %v1107, 7
        %v1109 = vsub.s32 %v1106, %v1108
        %v1110 = vrot.slane %v1102, %v1109
        %v1112 = vunpack.c.l.s4 1934713408
        %v1113 = vunpack.c.0.s8 %v1112
        %v1114 = vlaneseq
        %v1115 = vshrl.u32 %v1114, 7
        %v1116 = vsub.s32 %v1113, %v1115
        %v1117 = vrot.slane %v1103, %v1116
        %v1118 = vcombine.low %v1094, %v1110
        %v1119 = vcombine.high %v1094, %v1110
        %v1120 = vcombine.low %v1101, %v1117
        %v1121 = vcombine.high %v1101, %v1117
        %v1122 = vpack.c.bf16 %v1118, %v1118
        %v1123 = vpack.c.bf16 %v1119, %v1119
        %v1124 = vpack.c.bf16 %v1120, %v1120
        %v1125 = vpack.c.bf16 %v1121, %v1121
        %v1126 = vld [vmem:[#allocation2] sm:$0xf]
        %v1127 = vld [vmem:[#allocation2 + $0x4] sm:$0xf]
        %v1128 = vld [vmem:[#allocation2 + $0x8] sm:$0xf]
        %v1129 = vld [vmem:[#allocation2 + $0xc] sm:$0xf]
        %v1130 = vld [vmem:[#allocation3] sm:$0xf]
        %v1131 = vld [vmem:[#allocation3 + $0x4] sm:$0xf]
        %v1132 = vld [vmem:[#allocation3 + $0x8] sm:$0xf]
        %v1133 = vld [vmem:[#allocation3 + $0xc] sm:$0xf]
        %vm1134 = vcmask 64512
        %v1136 = vsel %vm1134, %v1122, 0
        %v1139 = vsel %vm1134, %v1126, 0
        %1141 = vmatprep.subr.bf16.mxu0 0
        %1142 = vmatpush1.bf16.xpose.msra.mxu0 %v1139
        %1143 = vmatprep.subr.bf16.mxu0 0
        %1144 = vmatpush1.bf16.xpose.msra.mxu0 0
        %1145 = vmatprep.subr.bf16.mxu0 0
        %1146 = vmatpush1.bf16.xpose.msra.mxu0 0
        %1147 = vmatprep.subr.bf16.mxu0 0
        %1148 = vmatpush1.bf16.xpose.msra.mxu0 0
        %1149 = vmatprep.subr.bf16.mxu0 0
        %1150 = vmatpush1.bf16.xpose.msra.mxu0 0
        %1151 = vmatprep.subr.bf16.mxu0 0
        %1152 = vmatpush1.bf16.xpose.msra.mxu0 0
        %1153 = vmatprep.subr.bf16.mxu0 0
        %1154 = vmatpush1.bf16.xpose.msra.mxu0 0
        %1155 = vmatprep.subr.bf16.mxu0 0
        %1156 = vmatpush1.bf16.xpose.msra.mxu0 0
        %1157 = vmatprep.subr.bf16.mxu0 0
        %1158 = vmatpush1.bf16.xpose.msra.mxu0 0
        %1159 = vmatprep.subr.bf16.mxu0 0
        %1160 = vmatpush1.bf16.xpose.msra.mxu0 0
        %1161 = vmatprep.subr.bf16.mxu0 0
        %1162 = vmatpush1.bf16.xpose.msra.mxu0 0
        %1163 = vmatprep.subr.bf16.mxu0 0
        %1164 = vmatpush1.bf16.xpose.msra.mxu0 0
        %1165 = vmatprep.subr.bf16.mxu0 0
        %1166 = vmatpush1.bf16.xpose.msra.mxu0 0
        %1167 = vmatprep.subr.bf16.mxu0 0
        %1168 = vmatpush1.bf16.xpose.msra.mxu0 0
        %1169 = vmatprep.subr.bf16.mxu0 0
        %1170 = vmatpush1.bf16.xpose.msra.mxu0 0
        %1171 = vmatprep.subr.bf16.mxu0 0
        %1172 = vmatpush1.bf16.xpose.msra.mxu0 0
        %1173 = vmatprep.mubr.bf16.mxu0 0
        %1174 = vmatmul.mubr.bf16.gmra.mrb[0].mxu0 %v1136
        %v1175 = vpop.f32.mrb[0].mxu0
        %v1176 = vadd.f32 0.0, %v1175
        %v1177 = vpop.f32.mrb[0].mxu0
        %v1178 = vpop.f32.mrb[0].mxu0
        %v1179 = vpop.f32.mrb[0].mxu0
        %1180 = vdwg.mxu0
        %v1182 = vsel %vm1134, %v1123, 0
        %v1185 = vsel %vm1134, %v1127, 0
        %1187 = vmatprep.subr.bf16.mxu0 0
        %1188 = vmatpush1.bf16.xpose.msra.mxu0 %v1185
        %1189 = vmatprep.subr.bf16.mxu0 0
        %1190 = vmatpush1.bf16.xpose.msra.mxu0 0
        %1191 = vmatprep.subr.bf16.mxu0 0
        %1192 = vmatpush1.bf16.xpose.msra.mxu0 0
        %1193 = vmatprep.subr.bf16.mxu0 0
        %1194 = vmatpush1.bf16.xpose.msra.mxu0 0
        %1195 = vmatprep.subr.bf16.mxu0 0
        %1196 = vmatpush1.bf16.xpose.msra.mxu0 0
        %1197 = vmatprep.subr.bf16.mxu0 0
        %1198 = vmatpush1.bf16.xpose.msra.mxu0 0
        %1199 = vmatprep.subr.bf16.mxu0 0
        %1200 = vmatpush1.bf16.xpose.msra.mxu0 0
        %1201 = vmatprep.subr.bf16.mxu0 0
        %1202 = vmatpush1.bf16.xpose.msra.mxu0 0
        %1203 = vmatprep.subr.bf16.mxu0 0
        %1204 = vmatpush1.bf16.xpose.msra.mxu0 0
        %1205 = vmatprep.subr.bf16.mxu0 0
        %1206 = vmatpush1.bf16.xpose.msra.mxu0 0
        %1207 = vmatprep.subr.bf16.mxu0 0
        %1208 = vmatpush1.bf16.xpose.msra.mxu0 0
        %1209 = vmatprep.subr.bf16.mxu0 0
        %1210 = vmatpush1.bf16.xpose.msra.mxu0 0
        %1211 = vmatprep.subr.bf16.mxu0 0
        %1212 = vmatpush1.bf16.xpose.msra.mxu0 0
        %1213 = vmatprep.subr.bf16.mxu0 0
        %1214 = vmatpush1.bf16.xpose.msra.mxu0 0
        %1215 = vmatprep.subr.bf16.mxu0 0
        %1216 = vmatpush1.bf16.xpose.msra.mxu0 0
        %1217 = vmatprep.subr.bf16.mxu0 0
        %1218 = vmatpush1.bf16.xpose.msra.mxu0 0
        %1219 = vmatprep.mubr.bf16.mxu0 0
        %1220 = vmatmul.mubr.bf16.gmra.mrb[0].mxu0 %v1182
        %v1221 = vpop.f32.mrb[0].mxu0
        %v1222 = vadd.f32 0.0, %v1221
        %v1223 = vpop.f32.mrb[0].mxu0
        %v1224 = vpop.f32.mrb[0].mxu0
        %v1225 = vpop.f32.mrb[0].mxu0
        %1226 = vdwg.mxu0
        %v1228 = vsel %vm1134, %v1124, 0
        %v1231 = vsel %vm1134, %v1128, 0
        %1233 = vmatprep.subr.bf16.mxu0 0
        %1234 = vmatpush1.bf16.xpose.msra.mxu0 %v1231
        %1235 = vmatprep.subr.bf16.mxu0 0
        %1236 = vmatpush1.bf16.xpose.msra.mxu0 0
        %1237 = vmatprep.subr.bf16.mxu0 0
        %1238 = vmatpush1.bf16.xpose.msra.mxu0 0
        %1239 = vmatprep.subr.bf16.mxu0 0
        %1240 = vmatpush1.bf16.xpose.msra.mxu0 0
        %1241 = vmatprep.subr.bf16.mxu0 0
        %1242 = vmatpush1.bf16.xpose.msra.mxu0 0
        %1243 = vmatprep.subr.bf16.mxu0 0
        %1244 = vmatpush1.bf16.xpose.msra.mxu0 0
        %1245 = vmatprep.subr.bf16.mxu0 0
        %1246 = vmatpush1.bf16.xpose.msra.mxu0 0
        %1247 = vmatprep.subr.bf16.mxu0 0
        %1248 = vmatpush1.bf16.xpose.msra.mxu0 0
        %1249 = vmatprep.subr.bf16.mxu0 0
        %1250 = vmatpush1.bf16.xpose.msra.mxu0 0
        %1251 = vmatprep.subr.bf16.mxu0 0
        %1252 = vmatpush1.bf16.xpose.msra.mxu0 0
        %1253 = vmatprep.subr.bf16.mxu0 0
        %1254 = vmatpush1.bf16.xpose.msra.mxu0 0
        %1255 = vmatprep.subr.bf16.mxu0 0
        %1256 = vmatpush1.bf16.xpose.msra.mxu0 0
        %1257 = vmatprep.subr.bf16.mxu0 0
        %1258 = vmatpush1.bf16.xpose.msra.mxu0 0
        %1259 = vmatprep.subr.bf16.mxu0 0
        %1260 = vmatpush1.bf16.xpose.msra.mxu0 0
        %1261 = vmatprep.subr.bf16.mxu0 0
        %1262 = vmatpush1.bf16.xpose.msra.mxu0 0
        %1263 = vmatprep.subr.bf16.mxu0 0
        %1264 = vmatpush1.bf16.xpose.msra.mxu0 0
        %1265 = vmatprep.mubr.bf16.mxu0 0
        %1266 = vmatmul.mubr.bf16.gmra.mrb[0].mxu0 %v1228
        %v1267 = vpop.f32.mrb[0].mxu0
        %v1268 = vadd.f32 0.0, %v1267
        %v1269 = vpop.f32.mrb[0].mxu0
        %v1270 = vpop.f32.mrb[0].mxu0
        %v1271 = vpop.f32.mrb[0].mxu0
        %1272 = vdwg.mxu0
        %v1274 = vsel %vm1134, %v1125, 0
        %v1277 = vsel %vm1134, %v1129, 0
        %1279 = vmatprep.subr.bf16.mxu0 0
        %1280 = vmatpush1.bf16.xpose.msra.mxu0 %v1277
        %1281 = vmatprep.subr.bf16.mxu0 0
        %1282 = vmatpush1.bf16.xpose.msra.mxu0 0
        %1283 = vmatprep.subr.bf16.mxu0 0
        %1284 = vmatpush1.bf16.xpose.msra.mxu0 0
        %1285 = vmatprep.subr.bf16.mxu0 0
        %1286 = vmatpush1.bf16.xpose.msra.mxu0 0
        %1287 = vmatprep.subr.bf16.mxu0 0
        %1288 = vmatpush1.bf16.xpose.msra.mxu0 0
        %1289 = vmatprep.subr.bf16.mxu0 0
        %1290 = vmatpush1.bf16.xpose.msra.mxu0 0
        %1291 = vmatprep.subr.bf16.mxu0 0
        %1292 = vmatpush1.bf16.xpose.msra.mxu0 0
        %1293 = vmatprep.subr.bf16.mxu0 0
        %1294 = vmatpush1.bf16.xpose.msra.mxu0 0
        %1295 = vmatprep.subr.bf16.mxu0 0
        %1296 = vmatpush1.bf16.xpose.msra.mxu0 0
        %1297 = vmatprep.subr.bf16.mxu0 0
        %1298 = vmatpush1.bf16.xpose.msra.mxu0 0
        %1299 = vmatprep.subr.bf16.mxu0 0
        %1300 = vmatpush1.bf16.xpose.msra.mxu0 0
        %1301 = vmatprep.subr.bf16.mxu0 0
        %1302 = vmatpush1.bf16.xpose.msra.mxu0 0
        %1303 = vmatprep.subr.bf16.mxu0 0
        %1304 = vmatpush1.bf16.xpose.msra.mxu0 0
        %1305 = vmatprep.subr.bf16.mxu0 0
        %1306 = vmatpush1.bf16.xpose.msra.mxu0 0
        %1307 = vmatprep.subr.bf16.mxu0 0
        %1308 = vmatpush1.bf16.xpose.msra.mxu0 0
        %1309 = vmatprep.subr.bf16.mxu0 0
        %1310 = vmatpush1.bf16.xpose.msra.mxu0 0
        %1311 = vmatprep.mubr.bf16.mxu0 0
        %1312 = vmatmul.mubr.bf16.gmra.mrb[0].mxu0 %v1274
        %v1313 = vpop.f32.mrb[0].mxu0
        %v1314 = vadd.f32 0.0, %v1313
        %v1315 = vpop.f32.mrb[0].mxu0
        %v1316 = vpop.f32.mrb[0].mxu0
        %v1317 = vpop.f32.mrb[0].mxu0
        %1318 = vdwg.mxu0
        %v1319 = vsel %vm1134, %v1176, -inf
        %1320 = vmax.xlane.f32.xlu0 %v1319
        %v1321 = vpop.xlane.xlu0 %1320
        %v1322 = vsel %vm1134, %v1222, -inf
        %1323 = vmax.xlane.f32.xlu0 %v1322
        %v1324 = vpop.xlane.xlu0 %1323
        %v1325 = vsel %vm1134, %v1268, -inf
        %1326 = vmax.xlane.f32.xlu0 %v1325
        %v1327 = vpop.xlane.xlu0 %1326
        %v1328 = vsel %vm1134, %v1314, -inf
        %1329 = vmax.xlane.f32.xlu0 %v1328
        %v1330 = vpop.xlane.xlu0 %1329
        %v1331 = vsub.f32 %v1176, %v1321
        %v1332 = vsub.f32 %v1222, %v1324
        %v1333 = vsub.f32 %v1268, %v1327
        %v1334 = vsub.f32 %v1314, %v1330
        %v1335 = vmul.f32 %v1331, 1.442695
        %v1336 = vpow.pop %v1335
        %v1337 = vmul.f32 %v1332, 1.442695
        %v1338 = vpow.pop %v1337
        %v1339 = vmul.f32 %v1333, 1.442695
        %v1340 = vpow.pop %v1339
        %v1341 = vmul.f32 %v1334, 1.442695
        %v1342 = vpow.pop %v1341
        %v1343 = vsel %vm1134, %v1336, 0.0
        %1344 = vadd.xlane.f32.xlu0 %v1343
        %v1345 = vpop.xlane.xlu0 %1344
        %v1346 = vsel %vm1134, %v1338, 0.0
        %1347 = vadd.xlane.f32.xlu0 %v1346
        %v1348 = vpop.xlane.xlu0 %1347
        %v1349 = vsel %vm1134, %v1340, 0.0
        %1350 = vadd.xlane.f32.xlu0 %v1349
        %v1351 = vpop.xlane.xlu0 %1350
        %v1352 = vsel %vm1134, %v1342, 0.0
        %1353 = vadd.xlane.f32.xlu0 %v1352
        %v1354 = vpop.xlane.xlu0 %1353
        %v1355 = vpack.c.bf16 %v1336, %v1336
        %v1356 = vpack.c.bf16 %v1338, %v1338
        %v1357 = vpack.c.bf16 %v1340, %v1340
        %v1358 = vpack.c.bf16 %v1342, %v1342
        %v1360 = vsel %vm1134, %v1355, 0
        %vm1362 = vcmask 1043456
        %v1364 = vsel %vm1362, %v1130, 0
        %1366 = vmatprep.subr.bf16.mxu0 0
        %1367 = vmatpush1.bf16.msra.mxu0 %v1364
        %1368 = vmatprep.subr.bf16.mxu0 0
        %1369 = vmatpush1.bf16.msra.mxu0 0
        %1370 = vmatprep.subr.bf16.mxu0 0
        %1371 = vmatpush1.bf16.msra.mxu0 0
        %1372 = vmatprep.subr.bf16.mxu0 0
        %1373 = vmatpush1.bf16.msra.mxu0 0
        %1374 = vmatprep.subr.bf16.mxu0 0
        %1375 = vmatpush1.bf16.msra.mxu0 0
        %1376 = vmatprep.subr.bf16.mxu0 0
        %1377 = vmatpush1.bf16.msra.mxu0 0
        %1378 = vmatprep.subr.bf16.mxu0 0
        %1379 = vmatpush1.bf16.msra.mxu0 0
        %1380 = vmatprep.subr.bf16.mxu0 0
        %1381 = vmatpush1.bf16.msra.mxu0 0
        %1382 = vmatprep.subr.bf16.mxu0 0
        %1383 = vmatpush1.bf16.msra.mxu0 0
        %1384 = vmatprep.subr.bf16.mxu0 0
        %1385 = vmatpush1.bf16.msra.mxu0 0
        %1386 = vmatprep.subr.bf16.mxu0 0
        %1387 = vmatpush1.bf16.msra.mxu0 0
        %1388 = vmatprep.subr.bf16.mxu0 0
        %1389 = vmatpush1.bf16.msra.mxu0 0
        %1390 = vmatprep.subr.bf16.mxu0 0
        %1391 = vmatpush1.bf16.msra.mxu0 0
        %1392 = vmatprep.subr.bf16.mxu0 0
        %1393 = vmatpush1.bf16.msra.mxu0 0
        %1394 = vmatprep.subr.bf16.mxu0 0
        %1395 = vmatpush1.bf16.msra.mxu0 0
        %1396 = vmatprep.subr.bf16.mxu0 0
        %1397 = vmatpush1.bf16.msra.mxu0 0
        %1398 = vmatprep.mubr.bf16.mxu0 0
        %1399 = vmatmul.mubr.bf16.gmra.mrb[0].mxu0 %v1360
        %v1400 = vpop.f32.mrb[0].mxu0
        %v1401 = vadd.f32 0.0, %v1400
        %v1402 = vpop.f32.mrb[0].mxu0
        %v1403 = vpop.f32.mrb[0].mxu0
        %v1404 = vpop.f32.mrb[0].mxu0
        %1405 = vdwg.mxu0
        %v1407 = vsel %vm1134, %v1356, 0
        %v1410 = vsel %vm1362, %v1131, 0
        %1412 = vmatprep.subr.bf16.mxu0 0
        %1413 = vmatpush1.bf16.msra.mxu0 %v1410
        %1414 = vmatprep.subr.bf16.mxu0 0
        %1415 = vmatpush1.bf16.msra.mxu0 0
        %1416 = vmatprep.subr.bf16.mxu0 0
        %1417 = vmatpush1.bf16.msra.mxu0 0
        %1418 = vmatprep.subr.bf16.mxu0 0
        %1419 = vmatpush1.bf16.msra.mxu0 0
        %1420 = vmatprep.subr.bf16.mxu0 0
        %1421 = vmatpush1.bf16.msra.mxu0 0
        %1422 = vmatprep.subr.bf16.mxu0 0
        %1423 = vmatpush1.bf16.msra.mxu0 0
        %1424 = vmatprep.subr.bf16.mxu0 0
        %1425 = vmatpush1.bf16.msra.mxu0 0
        %1426 = vmatprep.subr.bf16.mxu0 0
        %1427 = vmatpush1.bf16.msra.mxu0 0
        %1428 = vmatprep.subr.bf16.mxu0 0
        %1429 = vmatpush1.bf16.msra.mxu0 0
        %1430 = vmatprep.subr.bf16.mxu0 0
        %1431 = vmatpush1.bf16.msra.mxu0 0
        %1432 = vmatprep.subr.bf16.mxu0 0
        %1433 = vmatpush1.bf16.msra.mxu0 0
        %1434 = vmatprep.subr.bf16.mxu0 0
        %1435 = vmatpush1.bf16.msra.mxu0 0
        %1436 = vmatprep.subr.bf16.mxu0 0
        %1437 = vmatpush1.bf16.msra.mxu0 0
        %1438 = vmatprep.subr.bf16.mxu0 0
        %1439 = vmatpush1.bf16.msra.mxu0 0
        %1440 = vmatprep.subr.bf16.mxu0 0
        %1441 = vmatpush1.bf16.msra.mxu0 0
        %1442 = vmatprep.subr.bf16.mxu0 0
        %1443 = vmatpush1.bf16.msra.mxu0 0
        %1444 = vmatprep.mubr.bf16.mxu0 0
        %1445 = vmatmul.mubr.bf16.gmra.mrb[0].mxu0 %v1407
        %v1446 = vpop.f32.mrb[0].mxu0
        %v1447 = vadd.f32 0.0, %v1446
        %v1448 = vpop.f32.mrb[0].mxu0
        %v1449 = vpop.f32.mrb[0].mxu0
        %v1450 = vpop.f32.mrb[0].mxu0
        %1451 = vdwg.mxu0
        %v1453 = vsel %vm1134, %v1357, 0
        %v1456 = vsel %vm1362, %v1132, 0
        %1458 = vmatprep.subr.bf16.mxu0 0
        %1459 = vmatpush1.bf16.msra.mxu0 %v1456
        %1460 = vmatprep.subr.bf16.mxu0 0
        %1461 = vmatpush1.bf16.msra.mxu0 0
        %1462 = vmatprep.subr.bf16.mxu0 0
        %1463 = vmatpush1.bf16.msra.mxu0 0
        %1464 = vmatprep.subr.bf16.mxu0 0
        %1465 = vmatpush1.bf16.msra.mxu0 0
        %1466 = vmatprep.subr.bf16.mxu0 0
        %1467 = vmatpush1.bf16.msra.mxu0 0
        %1468 = vmatprep.subr.bf16.mxu0 0
        %1469 = vmatpush1.bf16.msra.mxu0 0
        %1470 = vmatprep.subr.bf16.mxu0 0
        %1471 = vmatpush1.bf16.msra.mxu0 0
        %1472 = vmatprep.subr.bf16.mxu0 0
        %1473 = vmatpush1.bf16.msra.mxu0 0
        %1474 = vmatprep.subr.bf16.mxu0 0
        %1475 = vmatpush1.bf16.msra.mxu0 0
        %1476 = vmatprep.subr.bf16.mxu0 0
        %1477 = vmatpush1.bf16.msra.mxu0 0
        %1478 = vmatprep.subr.bf16.mxu0 0
        %1479 = vmatpush1.bf16.msra.mxu0 0
        %1480 = vmatprep.subr.bf16.mxu0 0
        %1481 = vmatpush1.bf16.msra.mxu0 0
        %1482 = vmatprep.subr.bf16.mxu0 0
        %1483 = vmatpush1.bf16.msra.mxu0 0
        %1484 = vmatprep.subr.bf16.mxu0 0
        %1485 = vmatpush1.bf16.msra.mxu0 0
        %1486 = vmatprep.subr.bf16.mxu0 0
        %1487 = vmatpush1.bf16.msra.mxu0 0
        %1488 = vmatprep.subr.bf16.mxu0 0
        %1489 = vmatpush1.bf16.msra.mxu0 0
        %1490 = vmatprep.mubr.bf16.mxu0 0
        %1491 = vmatmul.mubr.bf16.gmra.mrb[0].mxu0 %v1453
        %v1492 = vpop.f32.mrb[0].mxu0
        %v1493 = vadd.f32 0.0, %v1492
        %v1494 = vpop.f32.mrb[0].mxu0
        %v1495 = vpop.f32.mrb[0].mxu0
        %v1496 = vpop.f32.mrb[0].mxu0
        %1497 = vdwg.mxu0
        %v1499 = vsel %vm1134, %v1358, 0
        %v1502 = vsel %vm1362, %v1133, 0
        %1504 = vmatprep.subr.bf16.mxu0 0
        %1505 = vmatpush1.bf16.msra.mxu0 %v1502
        %1506 = vmatprep.subr.bf16.mxu0 0
        %1507 = vmatpush1.bf16.msra.mxu0 0
        %1508 = vmatprep.subr.bf16.mxu0 0
        %1509 = vmatpush1.bf16.msra.mxu0 0
        %1510 = vmatprep.subr.bf16.mxu0 0
        %1511 = vmatpush1.bf16.msra.mxu0 0
        %1512 = vmatprep.subr.bf16.mxu0 0
        %1513 = vmatpush1.bf16.msra.mxu0 0
        %1514 = vmatprep.subr.bf16.mxu0 0
        %1515 = vmatpush1.bf16.msra.mxu0 0
        %1516 = vmatprep.subr.bf16.mxu0 0
        %1517 = vmatpush1.bf16.msra.mxu0 0
        %1518 = vmatprep.subr.bf16.mxu0 0
        %1519 = vmatpush1.bf16.msra.mxu0 0
        %1520 = vmatprep.subr.bf16.mxu0 0
        %1521 = vmatpush1.bf16.msra.mxu0 0
        %1522 = vmatprep.subr.bf16.mxu0 0
        %1523 = vmatpush1.bf16.msra.mxu0 0
        %1524 = vmatprep.subr.bf16.mxu0 0
        %1525 = vmatpush1.bf16.msra.mxu0 0
        %1526 = vmatprep.subr.bf16.mxu0 0
        %1527 = vmatpush1.bf16.msra.mxu0 0
        %1528 = vmatprep.subr.bf16.mxu0 0
        %1529 = vmatpush1.bf16.msra.mxu0 0
        %1530 = vmatprep.subr.bf16.mxu0 0
        %1531 = vmatpush1.bf16.msra.mxu0 0
        %1532 = vmatprep.subr.bf16.mxu0 0
        %1533 = vmatpush1.bf16.msra.mxu0 0
        %1534 = vmatprep.subr.bf16.mxu0 0
        %1535 = vmatpush1.bf16.msra.mxu0 0
        %1536 = vmatprep.mubr.bf16.mxu0 0
        %1537 = vmatmul.mubr.bf16.gmra.mrb[0].mxu0 %v1499
        %v1538 = vpop.f32.mrb[0].mxu0
        %v1539 = vadd.f32 0.0, %v1538
        %v1540 = vpop.f32.mrb[0].mxu0
        %v1541 = vpop.f32.mrb[0].mxu0
        %v1542 = vpop.f32.mrb[0].mxu0
        %1543 = vdwg.mxu0
        %v1544 = vrcp.pop %v1345
        %v1545 = vrcp.pop %v1348
        %v1546 = vrcp.pop %v1351
        %v1547 = vrcp.pop %v1354
        %v1548 = vmul.f32 %v1401, %v1544
        %v1549 = vmul.f32 %v1447, %v1545
        %v1550 = vmul.f32 %v1493, %v1546
        %v1551 = vmul.f32 %v1539, %v1547
        %v1552 = vcombine.low %v1548, %v1550
        %v1553 = vcombine.high %v1548, %v1550
        %v1555 = vunpack.c.l.s4 1983009808
        %v1556 = vunpack.c.0.s8 %v1555
        %v1557 = vlaneseq
        %v1558 = vshrl.u32 %v1557, 7
        %v1559 = vsub.s32 %v1556, %v1558
        %v1560 = vrot.slane %v1552, %v1559
        %v1562 = vunpack.c.l.s4 1983009808
        %v1563 = vunpack.c.0.s8 %v1562
        %v1564 = vlaneseq
        %v1565 = vshrl.u32 %v1564, 7
        %v1566 = vsub.s32 %v1563, %v1565
        %v1567 = vrot.slane %v1553, %v1566
        %v1568 = vcombine.low %v1549, %v1551
        %v1569 = vcombine.high %v1549, %v1551
        %v1571 = vunpack.c.l.s4 1983009808
        %v1572 = vunpack.c.0.s8 %v1571
        %v1573 = vlaneseq
        %v1574 = vshrl.u32 %v1573, 7
        %v1575 = vsub.s32 %v1572, %v1574
        %v1576 = vrot.slane %v1568, %v1575
        %v1578 = vunpack.c.l.s4 1983009808
        %v1579 = vunpack.c.0.s8 %v1578
        %v1580 = vlaneseq
        %v1581 = vshrl.u32 %v1580, 7
        %v1582 = vsub.s32 %v1579, %v1581
        %v1583 = vrot.slane %v1569, %v1582
        %v1584 = vcombine.low %v1560, %v1576
        %v1585 = vcombine.high %v1560, %v1576
        %v1587 = vunpack.c.l.s4 1934713408
        %v1588 = vunpack.c.0.s8 %v1587
        %v1589 = vlaneseq
        %v1590 = vshrl.u32 %v1589, 7
        %v1591 = vsub.s32 %v1588, %v1590
        %v1592 = vrot.slane %v1584, %v1591
        %v1594 = vunpack.c.l.s4 1934713408
        %v1595 = vunpack.c.0.s8 %v1594
        %v1596 = vlaneseq
        %v1597 = vshrl.u32 %v1596, 7
        %v1598 = vsub.s32 %v1595, %v1597
        %v1599 = vrot.slane %v1585, %v1598
        %v1600 = vcombine.low %v1567, %v1583
        %v1601 = vcombine.high %v1567, %v1583
        %v1603 = vunpack.c.l.s4 1934713408
        %v1604 = vunpack.c.0.s8 %v1603
        %v1605 = vlaneseq
        %v1606 = vshrl.u32 %v1605, 7
        %v1607 = vsub.s32 %v1604, %v1606
        %v1608 = vrot.slane %v1600, %v1607
        %v1610 = vunpack.c.l.s4 1934713408
        %v1611 = vunpack.c.0.s8 %v1610
        %v1612 = vlaneseq
        %v1613 = vshrl.u32 %v1612, 7
        %v1614 = vsub.s32 %v1611, %v1613
        %v1615 = vrot.slane %v1601, %v1614
        %v1616 = vcombine.high %v1592, 0.0
        %v1617 = vcombine.high %v1599, 0.0
        %v1618 = vcombine.high %v1608, 0.0
        %v1619 = vcombine.high %v1615, 0.0
        %v1620 = vcombine.low %v1592, %v1599
        %v1622 = vunpack.c.l.s4 1983009808
        %v1623 = vunpack.c.0.s8 %v1622
        %v1624 = vlaneseq
        %v1625 = vshrl.u32 %v1624, 7
        %v1626 = vsub.s32 %v1623, %v1625
        %v1627 = vrot.slane %v1620, %v1626
        %v1628 = vcombine.low %v1616, %v1617
        %v1630 = vunpack.c.l.s4 1983009808
        %v1631 = vunpack.c.0.s8 %v1630
        %v1632 = vlaneseq
        %v1633 = vshrl.u32 %v1632, 7
        %v1634 = vsub.s32 %v1631, %v1633
        %v1635 = vrot.slane %v1628, %v1634
        %v1636 = vcombine.low %v1608, %v1615
        %v1638 = vunpack.c.l.s4 1983009808
        %v1639 = vunpack.c.0.s8 %v1638
        %v1640 = vlaneseq
        %v1641 = vshrl.u32 %v1640, 7
        %v1642 = vsub.s32 %v1639, %v1641
        %v1643 = vrot.slane %v1636, %v1642
        %v1644 = vcombine.low %v1618, %v1619
        %v1646 = vunpack.c.l.s4 1983009808
        %v1647 = vunpack.c.0.s8 %v1646
        %v1648 = vlaneseq
        %v1649 = vshrl.u32 %v1648, 7
        %v1650 = vsub.s32 %v1647, %v1649
        %v1651 = vrot.slane %v1644, %v1650
        %v1652 = vcombine.low %v1627, %v1635
        %v1653 = vcombine.high %v1627, %v1635
        %v1655 = vunpack.c.l.s4 1934713408
        %v1656 = vunpack.c.0.s8 %v1655
        %v1657 = vlaneseq
        %v1658 = vshrl.u32 %v1657, 7
        %v1659 = vsub.s32 %v1656, %v1658
        %v1660 = vrot.slane %v1652, %v1659
        %v1662 = vunpack.c.l.s4 1934713408
        %v1663 = vunpack.c.0.s8 %v1662
        %v1664 = vlaneseq
        %v1665 = vshrl.u32 %v1664, 7
        %v1666 = vsub.s32 %v1663, %v1665
        %v1667 = vrot.slane %v1653, %v1666
        %v1668 = vcombine.low %v1643, %v1651
        %v1669 = vcombine.high %v1643, %v1651
        %v1671 = vunpack.c.l.s4 1934713408
        %v1672 = vunpack.c.0.s8 %v1671
        %v1673 = vlaneseq
        %v1674 = vshrl.u32 %v1673, 7
        %v1675 = vsub.s32 %v1672, %v1674
        %v1676 = vrot.slane %v1668, %v1675
        %v1678 = vunpack.c.l.s4 1934713408
        %v1679 = vunpack.c.0.s8 %v1678
        %v1680 = vlaneseq
        %v1681 = vshrl.u32 %v1680, 7
        %v1682 = vsub.s32 %v1679, %v1681
        %v1683 = vrot.slane %v1669, %v1682
        %v1684 = vcombine.low %v1660, %v1676
        %v1685 = vcombine.high %v1660, %v1676
        %v1686 = vcombine.low %v1667, %v1683
        %v1687 = vcombine.high %v1667, %v1683
        %1689 = vrot.lane.b32.xlu0 %v1685, 8
        %v1690 = vpop.permute.xlu0 %1689
        %1693 = vrot.lane.b32.xlu0 %v1686, 16
        %v1694 = vpop.permute.xlu0 %1693
        %1697 = vrot.lane.b32.xlu0 %v1687, 24
        %v1698 = vpop.permute.xlu0 %1697
        %v1700 = vsel %vm1134, %v1684, %v1690
        %vm1701 = vcmask 130048
        %v1702 = vsel %vm1701, %v1700, %v1694
        %vm1703 = vcmask 195584
        %v1704 = vsel %vm1703, %v1702, %v1698
        %v1705 = vpack.c.bf16 %v1704, %v1704
        %v1706 = vld [vmem:[#allocation13] sm:$0xf]
        %v1707 = vld [vmem:[#allocation13 + $0x4] sm:$0xf]
        %v1708 = vld [vmem:[#allocation13 + $0x8] sm:$0xf]
        %v1709 = vld [vmem:[#allocation13 + $0xc] sm:$0xf]
        %v1710 = vlaneseq
        %v1711 = vshrl.u32 %v1710, 7
        %v1712 = vsub.s32 0, %v1711
        %v1713 = vrot.slane %v422, %v1712
        %v1718 = vunpack.c.l.b16 %v1706
        %v1719 = vunpack.c.l.b16 %v1707
        %v1720 = vunpack.c.l.b16 %v1708
        %v1721 = vunpack.c.l.b16 %v1709
        %v1722 = vpack.c.b16 %v1719, %v1718
        %v1723 = vpack.c.b16 %v1721, %v1720
        %v1727 = vsel %vm931, %v1705, 0
        %1729 = vmatprep.subr.bf16.mxu0 0
        %1730 = vmatpush1.bf16.msra.mxu0 %v1722
        %1731 = vmatprep.subr.bf16.mxu0 0
        %1732 = vmatpush1.bf16.msra.mxu0 %v1723
        %1733 = vmatprep.subr.bf16.mxu0 0
        %1734 = vmatpush1.bf16.msra.mxu0 0
        %1735 = vmatprep.subr.bf16.mxu0 0
        %1736 = vmatpush1.bf16.msra.mxu0 0
        %1737 = vmatprep.subr.bf16.mxu0 0
        %1738 = vmatpush1.bf16.msra.mxu0 0
        %1739 = vmatprep.subr.bf16.mxu0 0
        %1740 = vmatpush1.bf16.msra.mxu0 0
        %1741 = vmatprep.subr.bf16.mxu0 0
        %1742 = vmatpush1.bf16.msra.mxu0 0
        %1743 = vmatprep.subr.bf16.mxu0 0
        %1744 = vmatpush1.bf16.msra.mxu0 0
        %1745 = vmatprep.subr.bf16.mxu0 0
        %1746 = vmatpush1.bf16.msra.mxu0 0
        %1747 = vmatprep.subr.bf16.mxu0 0
        %1748 = vmatpush1.bf16.msra.mxu0 0
        %1749 = vmatprep.subr.bf16.mxu0 0
        %1750 = vmatpush1.bf16.msra.mxu0 0
        %1751 = vmatprep.subr.bf16.mxu0 0
        %1752 = vmatpush1.bf16.msra.mxu0 0
        %1753 = vmatprep.subr.bf16.mxu0 0
        %1754 = vmatpush1.bf16.msra.mxu0 0
        %1755 = vmatprep.subr.bf16.mxu0 0
        %1756 = vmatpush1.bf16.msra.mxu0 0
        %1757 = vmatprep.subr.bf16.mxu0 0
        %1758 = vmatpush1.bf16.msra.mxu0 0
        %1759 = vmatprep.subr.bf16.mxu0 0
        %1760 = vmatpush1.bf16.msra.mxu0 0
        %1761 = vmatprep.mubr.bf16.mxu0 0
        %1762 = vmatmul.mubr.bf16.gmra.mrb[0].mxu0 %v1727
        %v1763 = vpop.f32.mrb[0].mxu0
        %v1764 = vadd.f32 %v1713, %v1763
        %v1765 = vpop.f32.mrb[0].mxu0
        %v1766 = vpop.f32.mrb[0].mxu0
        %v1767 = vpop.f32.mrb[0].mxu0
        %1768 = vdwg.mxu0
        %v1769 = vadd.f32 %v909, %v1764
        %v1770 = vsel %vm931, %v1769, 0.0
        %1771 = vadd.xlane.f32.xlu0 %v1770
        %v1772 = vpop.xlane.xlu0 %1771
        %v1773 = vrcp.pop 32.0
        %v1774 = vmul.f32 %v1772, %v1773
        %v1775 = vsub.f32 %v1769, %v1774
        %v1776 = vmul.f32 %v1775, %v1775
        %v1777 = vsel %vm931, %v1776, 0.0
        %1778 = vadd.xlane.f32.xlu0 %v1777
        %v1779 = vpop.xlane.xlu0 %1778
        %v1780 = vmul.f32 %v1779, %v1773
        %v1781 = vadd.f32 %v1780, 1e-05
        %v1782 = vrsqrt.pop %v1781
        %v1783 = vmul.f32 %v1775, %v1782
        %v1784 = vlaneseq
        %v1785 = vshrl.u32 %v1784, 7
        %v1786 = vsub.s32 0, %v1785
        %v1787 = vrot.slane %v423, %v1786
        %v1788 = vmul.f32 %v1783, %v1787
        %v1789 = vlaneseq
        %v1790 = vshrl.u32 %v1789, 7
        %v1791 = vsub.s32 0, %v1790
        %v1792 = vrot.slane %v424, %v1791
        %v1793 = vadd.f32 %v1788, %v1792
        %1794 = vst.msk [vmem:[%s417] sm:$0xff] %vm931, %v1793
        %s1795 = sand.u32 %s210, 1
        %s1796 = scalar_lea.sflag [#allocation6], %s1795
        %s1797 = sand.u32 %s210, 1
        %s1798 = smul.addr %s1797, 8
        %s1799 = scalar_lea.vmem [#allocation16], %s1798
        // Predicated region
        $region81: #{tpu_custom_call.1} parent=47 // pred_check
          %p1800 = pneg %p220
        $region82: #{tpu_custom_call.1} parent=47 // pred_check_branch
          %1802 = sbr.rel (%p1800) target = $region84
        $region83: #{tpu_custom_call.1} parent=47 // pred_region
          %s1804 = ssub.s32 128, 128
          %1805 = vsyncadd %s1796, %s1804
          %s1806 = sadd.s32 %s34, %s33
          %s1807 = smul.addr %s1806, 128
          %s1808 = scalar_lea.hbm %s7, %s1807
          %s1810 = sshll.u32 %s1799, 4
          %s1811 = int_to_ptr.vmem [resolvable:$true] %s1810
          %1813 = dma.vmem_to_hbm [thread:$0]  %s1811, 128, %s1808, %s1796
        $region84: #{tpu_custom_call.1} parent=47 // pred_fallthru
          _
      $region48: #{tpu_custom_call.1} parent=5 // pred_fallthru
        _
      %p1814 = scmp.le.s32.totalorder 2, %s24
      // Predicated region
      $region85: #{tpu_custom_call.1} parent=5 // pred_check
        %p1815 = pneg %p1814
      $region86: #{tpu_custom_call.1} parent=5 // pred_check_branch
        %1817 = sbr.rel (%p1815) target = $region88
      $region87: #{tpu_custom_call.1} parent=5 // pred_region
        %s1818 = ssub.s32 %s24, 2
        // Predicated region
        $region89: #{tpu_custom_call.1} parent=87 // pred_check
          %p1819 = pneg %p226
        $region90: #{tpu_custom_call.1} parent=87 // pred_check_branch
          %1821 = sbr.rel (%p1819) target = $region92
        $region91: #{tpu_custom_call.1} parent=87 // pred_region
          %s1822 = sand.u32 %s211, 1
          %s1823 = scalar_lea.sflag [#allocation6], %s1822
          %s1824 = sand.u32 %s211, 1
          %s1825 = smul.addr %s1824, 8
          %s1826 = scalar_lea.vmem [#allocation16], %s1825
          %1827 = dma.done %s1823, 128
        $region92: #{tpu_custom_call.1} parent=87 // pred_fallthru
          _
      $region88: #{tpu_custom_call.1} parent=5 // pred_fallthru
        _
    $region6: #{tpu_custom_call.1} parent=1 // loop_footer
      %s28 = sadd.s32 1, %s24
    $region7: #{tpu_custom_call.1} parent=1 // loop_footer_branch
      %23 = sbr.rel target = $region3
    $region8: #{tpu_custom_call.1} parent=1 // loop_exit
      _
    %1828 = vsyncpa [#allocation5], 1
    %s1829 = scalar_lea.sflag [#allocation5], 1
    %1830 = vsyncpa %s1829, 1
    %1831 = vsyncpa [#allocation8], 1
    %s1832 = scalar_lea.sflag [#allocation8], 1
    %1833 = vsyncpa %s1832, 1
    %1834 = vsyncpa [#allocation11], 1
    %1835 = vsyncpa [#allocation14], 1
    %1836 = vsyncpa [#allocation6], 1
    %s1837 = scalar_lea.sflag [#allocation6], 1
    %1838 = vsyncpa %s1837, 1

</llo_original>
